<compile_context>
chip_gen: v7x
topology: tpu7x:2x2x1
jax: 0.10.0
libtpu: 0.0.40
codegen_flags: <defaults>
</compile_context>

<pallas_src>
import functools

import jax
import jax.numpy as jnp
from jax.experimental import pallas as pl
from jax.experimental.pallas import tpu as pltpu


def _round_up(x, m):
    return ((x + m - 1) // m) * m


def _lstm_kernel(x_ref, len_ref, wih_ref, whh_ref, bias_ref,
                 out_ref, hn_ref, cn_ref, gx_ref, *, tt, h_pad, unroll):
    """One grid step = one (batch block, time block).

    x_ref   : (tt, b_blk, I_pad)   bf16 padded inputs (time-major)
    len_ref : (b_blk, 1) int32     per-sequence valid lengths
    wih_ref : (I_pad, 4*H_pad)     bf16 input->gates weight (transposed)
    whh_ref : (H_pad, 4*H_pad)     bf16 hidden->gates weight (transposed)
    bias_ref: (1, 4*H_pad)         f32 combined bias (gate-slab layout)
    out_ref : (tt, b_blk, H_pad)   per-timestep outputs (zero past length)
    hn_ref  : (b_blk, H_pad)       hidden carry / final hidden state
    cn_ref  : (b_blk, H_pad)       cell carry / final cell state
    gx_ref  : (tt*b_blk, 4*H_pad)  f32 scratch: fused input projection
    """
    t_blk = pl.program_id(1)                 # time axis (innermost, sequential)
    H = h_pad
    b_blk = x_ref.shape[1]
    i_pad = x_ref.shape[2]

    @pl.when(t_blk == 0)
    def _():
        hn_ref[...] = jnp.zeros_like(hn_ref)
        cn_ref[...] = jnp.zeros_like(cn_ref)

    # Hoisted, VMEM-resident for the whole time block.
    lens = len_ref[...]                       # (b_blk, 1) int32
    w_hh = whh_ref[...]                       # (H_pad, 4*H_pad) bf16

    # ---- fused input projection: one big bf16 MXU matmul per time block ----
    xb = x_ref[...].reshape(tt * b_blk, i_pad)                      # bf16
    gx_ref[...] = jnp.dot(xb, wih_ref[...],
                          preferred_element_type=jnp.float32) + bias_ref[...]

    def step(tt_i, _):
        t_global = t_blk * tt + tt_i
        h_prev = hn_ref[...]
        c_prev = cn_ref[...]

        row0 = pl.multiple_of(tt_i * b_blk, b_blk)
        gates = gx_ref[pl.ds(row0, b_blk), :] + jnp.dot(
            h_prev.astype(jnp.bfloat16), w_hh,
            preferred_element_type=jnp.float32)

        # Gate slabs are 128-lane aligned, ordered (i, f, o, g):
        # one contiguous sigmoid slab + one tanh slab.
        sig = jax.nn.sigmoid(gates[:, 0:3 * H])
        i_g = sig[:, 0 * H:1 * H]
        f_g = sig[:, 1 * H:2 * H]
        o_g = sig[:, 2 * H:3 * H]
        g_g = jnp.tanh(gates[:, 3 * H:4 * H])

        c_new = f_g * c_prev + i_g * g_g
        h_new = o_g * jnp.tanh(c_new)

        # Packed-sequence semantics: freeze state / emit zeros past length.
        m = jnp.broadcast_to(t_global < lens, h_new.shape)   # one broadcast
        cn_ref[...] = jnp.where(m, c_new, c_prev)
        hn_ref[...] = jnp.where(m, h_new, h_prev)
        out_ref[tt_i] = jnp.where(m, h_new, 0.0)
        return 0

    jax.lax.fori_loop(0, tt, step, 0, unroll=unroll)


def lstm_event_specific_pack(x, lengths, w_ih, w_hh, b_ih, b_hh,
                             *, time_block=8, batch_block=None):
    """x: (B, T, I) batch-first padded input; lengths: (B,) int32.

    Returns (lstm_out, (hn, cn)): lstm_out (B, T, H) zero past each length,
    hn / cn (1, B, H) = state at last valid step (PyTorch packed semantics).
    """
    B, T, I = x.shape
    H = w_hh.shape[1]
    assert w_ih.shape == (4 * H, I)
    assert w_hh.shape == (4 * H, H)

    if T == 0:   # degenerate packed sequence
        z = jnp.zeros((1, B, H), jnp.float32)
        return jnp.zeros((B, 0, H), jnp.float32), (z, z)

    f32, bf16 = jnp.float32, jnp.bfloat16

    # ---- lane/sublane-aligned padded layout --------------------------------
    H_pad = _round_up(H, 128)                  # lane axis
    I_pad = _round_up(I, 128)
    if batch_block is None:
        B_pad = _round_up(B, 8)
        b_blk = B_pad                          # full-dim block: always legal
    else:
        b_blk = _round_up(batch_block, 16)     # bf16-safe sublane multiple
        B_pad = _round_up(B, b_blk)
    TT = min(time_block, T)
    T_pad = _round_up(T, TT)
    num_b_blocks = B_pad // b_blk
    num_t_blocks = T_pad // TT

    # Gate reorder i,f,g,o -> i,f,o,g: contiguous sigmoid slab, tanh slab last.
    perm = jnp.array([0, 1, 3, 2])
    wih4 = w_ih.astype(f32).reshape(4, H, I)[perm]
    whh4 = w_hh.astype(f32).reshape(4, H, H)[perm]
    bias4 = (b_ih + b_hh).astype(f32).reshape(4, H)[perm]

    # W^T with each gate in its own 128-aligned lane slab; bf16 MXU operands.
    wih_p = jnp.pad(jnp.transpose(wih4, (2, 0, 1)),
                    ((0, I_pad - I), (0, 0), (0, H_pad - H)))
    wih_p = wih_p.reshape(I_pad, 4 * H_pad).astype(bf16)
    whh_p = jnp.pad(jnp.transpose(whh4, (2, 0, 1)),
                    ((0, H_pad - H), (0, 0), (0, H_pad - H)))
    whh_p = whh_p.reshape(H_pad, 4 * H_pad).astype(bf16)
    bias_p = jnp.pad(bias4, ((0, 0), (0, H_pad - H))).reshape(1, 4 * H_pad)

    # Time-major bf16 input; projection is fused in-kernel (no gx in HBM).
    x_tm = jnp.swapaxes(x, 0, 1).astype(bf16)
    x_p = jnp.pad(x_tm, ((0, T_pad - T), (0, B_pad - B), (0, I_pad - I)))

    # Lengths clamped to T (PackedSequence contract).
    len_p = jnp.pad(jnp.minimum(lengths.astype(jnp.int32), T),
                    (0, B_pad - B)).reshape(B_pad, 1)

    kernel = functools.partial(_lstm_kernel, tt=TT, h_pad=H_pad,
                               unroll=True if TT <= 8 else 4)

    out_tm, hn, cn = pl.pallas_call(
        kernel,
        out_shape=(
            jax.ShapeDtypeStruct((T_pad, B_pad, H_pad), f32),
            jax.ShapeDtypeStruct((B_pad, H_pad), f32),
            jax.ShapeDtypeStruct((B_pad, H_pad), f32),
        ),
        grid_spec=pltpu.PrefetchScalarGridSpec(
            num_scalar_prefetch=0,
            grid=(num_b_blocks, num_t_blocks),      # batch outer, time inner
            in_specs=[
                pl.BlockSpec((TT, b_blk, I_pad), lambda b, t: (t, b, 0)),
                pl.BlockSpec((b_blk, 1), lambda b, t: (b, 0)),
                pl.BlockSpec((I_pad, 4 * H_pad), lambda b, t: (0, 0)),
                pl.BlockSpec((H_pad, 4 * H_pad), lambda b, t: (0, 0)),
                pl.BlockSpec((1, 4 * H_pad), lambda b, t: (0, 0)),
            ],
            out_specs=[
                pl.BlockSpec((TT, b_blk, H_pad), lambda b, t: (t, b, 0)),
                pl.BlockSpec((b_blk, H_pad), lambda b, t: (b, 0)),   # hn carry
                pl.BlockSpec((b_blk, H_pad), lambda b, t: (b, 0)),   # cn carry
            ],
            scratch_shapes=[pltpu.VMEM((TT * b_blk, 4 * H_pad), f32)],
        ),
        compiler_params=pltpu.CompilerParams(
            dimension_semantics=("parallel", "arbitrary"),
            vmem_limit_bytes=32 * 1024 * 1024),
    )(x_p, len_p, wih_p, whh_p, bias_p)

    lstm_out = jnp.swapaxes(out_tm[:T, :B, :H], 0, 1)                # (B, T, H)
    return lstm_out, (hn[:B, :H][None], cn[:B, :H][None])            # (1, B, H)


def _reference(x, lengths, w_ih, w_hh, b_ih, b_hh, *, emulate_bf16_mxu=False):
    """Pure-JAX reference (lax.scan). If emulate_bf16_mxu, mirror the kernel's
    bf16 MXU operands (f32 accumulation) for a tight numeric check."""
    B, T, I = x.shape
    H = w_hh.shape[1]
    bias = (b_ih + b_hh).astype(jnp.float32)
    prec = jax.lax.Precision.HIGHEST

    def cast(a):
        return a.astype(jnp.bfloat16).astype(jnp.float32) if emulate_bf16_mxu else a

    wih = cast(w_ih.astype(jnp.float32))
    whh = cast(w_hh.astype(jnp.float32))
    x_c = cast(x.astype(jnp.float32))

    def step(carry, inp):
        h, c = carry
        x_t, m = inp
        gates = (jnp.dot(x_t, wih.T, precision=prec)
                 + jnp.dot(cast(h), whh.T, precision=prec) + bias)
        i_g = jax.nn.sigmoid(gates[:, 0 * H:1 * H])
        f_g = jax.nn.sigmoid(gates[:, 1 * H:2 * H])
        g_g = jnp.tanh(gates[:, 2 * H:3 * H])
        o_g = jax.nn.sigmoid(gates[:, 3 * H:4 * H])
        c_new = f_g * c + i_g * g_g
        h_new = o_g * jnp.tanh(c_new)
        c_out = jnp.where(m, c_new, c)
        h_out = jnp.where(m, h_new, h)
        return (h_out, c_out), jnp.where(m, h_new, 0.0)

    x_tm = jnp.swapaxes(x_c, 0, 1)
    mask = (jnp.arange(T)[:, None] < lengths[None, :])[:, :, None]
    (hn, cn), outs = jax.lax.scan(
        step,
        (jnp.zeros((B, H), jnp.float32), jnp.zeros((B, H), jnp.float32)),
        (x_tm, mask))
    return jnp.swapaxes(outs, 0, 1), hn[None], cn[None]


if __name__ == "__main__":
    key = jax.random.PRNGKey(0)
    B, T, INPUT, HIDDEN = 4, 8, 16, 12   # module defaults: hidden_size=12, num_layers=1

    k_x, k1, k2, k3, k4 = jax.random.split(key, 5)
    x = jax.random.normal(k_x, (B, T, INPUT), dtype=jnp.float32)
    lengths = jnp.array([8, 5, 3, 7], dtype=jnp.int32)   # packed-sequence lengths

    # nn.LSTM init scheme: U(-1/sqrt(H), 1/sqrt(H)).
    bound = 1.0 / jnp.sqrt(jnp.float32(HIDDEN))
    w_ih = jax.random.uniform(k1, (4 * HIDDEN, INPUT), minval=-bound, maxval=bound)
    w_hh = jax.random.uniform(k2, (4 * HIDDEN, HIDDEN), minval=-bound, maxval=bound)
    b_ih = jax.random.uniform(k3, (4 * HIDDEN,), minval=-bound, maxval=bound)
    b_hh = jax.random.uniform(k4, (4 * HIDDEN,), minval=-bound, maxval=bound)

    lstm_out, (hn, cn) = jax.jit(lstm_event_specific_pack)(
        x, lengths, w_ih, w_hh, b_ih, b_hh)
    jax.block_until_ready((lstm_out, hn, cn))

    # Tight check vs a reference that uses the same bf16-MXU-operand numerics.
    r_out, r_hn, r_cn = _reference(x, lengths, w_ih, w_hh, b_ih, b_hh,
                                   emulate_bf16_mxu=True)
    assert jnp.allclose(lstm_out, r_out, atol=1e-4, rtol=1e-4)
    assert jnp.allclose(hn, r_hn, atol=1e-4, rtol=1e-4)
    assert jnp.allclose(cn, r_cn, atol=1e-4, rtol=1e-4)

    # Looser check vs the pure-f32 module semantics (bf16 MXU is intentional).
    f_out, f_hn, f_cn = _reference(x, lengths, w_ih, w_hh, b_ih, b_hh)
    assert jnp.allclose(lstm_out, f_out, atol=3e-2, rtol=3e-2)
    assert jnp.allclose(hn, f_hn, atol=3e-2, rtol=3e-2)
    assert jnp.allclose(cn, f_cn, atol=3e-2, rtol=3e-2)

    print("KERNEL_OK")
</pallas_src>

<mosaic_0001>
module attributes {stable_mosaic.version = 11 : i64} {
  func.func @_lstm_kernel(%arg0: i32, %arg1: i32, %arg2: memref<8x8x128xbf16, #tpu.memory_space<vmem>>, %arg3: memref<8x1xi32, #tpu.memory_space<vmem>>, %arg4: memref<128x512xbf16, #tpu.memory_space<vmem>>, %arg5: memref<128x512xbf16, #tpu.memory_space<vmem>>, %arg6: memref<1x512xf32, #tpu.memory_space<vmem>>, %arg7: memref<8x8x128xf32, #tpu.memory_space<vmem>>, %arg8: memref<8x128xf32, #tpu.memory_space<vmem>>, %arg9: memref<8x128xf32, #tpu.memory_space<vmem>>, %arg10: memref<64x512xf32, #tpu.memory_space<vmem>>) attributes {dimension_semantics = [#tpu.dimension_semantics<parallel>, #tpu.dimension_semantics<arbitrary>], iteration_bounds = array<i64: 1, 1>, scalar_prefetch = 0 : i64, scratch_operands = 1 : i64, tpu.core_type = #tpu.core_type<tc>, window_params = [{transform_indices = @transform_0, window_bounds = array<i64: 8, 8, 128>}, {transform_indices = @transform_1, window_bounds = array<i64: 8, 1>}, {pipeline_mode = #tpu.pipeline_mode<synchronous>, transform_indices = @transform_2, window_bounds = array<i64: 128, 512>}, {pipeline_mode = #tpu.pipeline_mode<synchronous>, transform_indices = @transform_3, window_bounds = array<i64: 128, 512>}, {pipeline_mode = #tpu.pipeline_mode<synchronous>, transform_indices = @transform_4, window_bounds = array<i64: 1, 512>}, {transform_indices = @transform_5, window_bounds = array<i64: 8, 8, 128>}, {transform_indices = @transform_6, window_bounds = array<i64: 8, 128>}, {transform_indices = @transform_7, window_bounds = array<i64: 8, 128>}]} {
    %c0_i32 = arith.constant 0 : i32
    %0 = arith.cmpi eq, %arg1, %c0_i32 : i32
    %1 = arith.extui %0 : i1 to i32
    %c0_i32_0 = arith.constant 0 : i32
    %2 = arith.cmpi ne, %1, %c0_i32_0 : i32
    scf.if %2 {
      %cst_142 = arith.constant 0.000000e+00 : f32
      %341 = vector.broadcast %cst_142 : f32 to vector<8x128xf32>
      %c0_143 = arith.constant 0 : index
      %c0_144 = arith.constant 0 : index
      %342 = vector.load %arg8[%c0_143, %c0_144] : memref<8x128xf32, #tpu.memory_space<vmem>>, vector<8x128xf32>
      tpu.vector_store %arg8[%c0_143, %c0_144], %341 {strides = array<i32>} : memref<8x128xf32, #tpu.memory_space<vmem>>, vector<8x128xf32>,
      %cst_145 = arith.constant 0.000000e+00 : f32
      %343 = vector.broadcast %cst_145 : f32 to vector<8x128xf32>
      %c0_146 = arith.constant 0 : index
      %c0_147 = arith.constant 0 : index
      %344 = vector.load %arg9[%c0_146, %c0_147] : memref<8x128xf32, #tpu.memory_space<vmem>>, vector<8x128xf32>
      tpu.vector_store %arg9[%c0_146, %c0_147], %343 {strides = array<i32>} : memref<8x128xf32, #tpu.memory_space<vmem>>, vector<8x128xf32>,
    } else {
    }
    %c0 = arith.constant 0 : index
    %c0_1 = arith.constant 0 : index
    %3 = vector.load %arg3[%c0, %c0_1] : memref<8x1xi32, #tpu.memory_space<vmem>>, vector<8x1xi32>
    %c0_2 = arith.constant 0 : index
    %c0_3 = arith.constant 0 : index
    %4 = vector.load %arg5[%c0_2, %c0_3] : memref<128x512xbf16, #tpu.memory_space<vmem>>, vector<128x512xbf16>
    %c0_4 = arith.constant 0 : index
    %c0_5 = arith.constant 0 : index
    %c0_6 = arith.constant 0 : index
    %5 = vector.load %arg2[%c0_4, %c0_5, %c0_6] : memref<8x8x128xbf16, #tpu.memory_space<vmem>>, vector<8x8x128xbf16>
    %6 = vector.shape_cast %5 : vector<8x8x128xbf16> to vector<64x128xbf16>
    %c0_7 = arith.constant 0 : index
    %c0_8 = arith.constant 0 : index
    %7 = vector.load %arg4[%c0_7, %c0_8] : memref<128x512xbf16, #tpu.memory_space<vmem>>, vector<128x512xbf16>
    %cst = arith.constant dense<0.000000e+00> : vector<64x512xf32>
    %8 = tpu.matmul %6, %7, %cst {dimension_numbers = #tpu.dot_dimension_numbers<[1], [0], [0], [1], [0, 0, 1, 1], [], []>} : vector<64x128xbf16>, vector<128x512xbf16>, vector<64x512xf32> -> vector<64x512xf32>
    %c0_9 = arith.constant 0 : index
    %c0_10 = arith.constant 0 : index
    %9 = vector.load %arg6[%c0_9, %c0_10] : memref<1x512xf32, #tpu.memory_space<vmem>>, vector<1x512xf32>
    %10 = vector.broadcast %9 : vector<1x512xf32> to vector<64x512xf32>
    %11 = arith.addf %8, %10 : vector<64x512xf32>
    %c0_11 = arith.constant 0 : index
    %c0_12 = arith.constant 0 : index
    %12 = vector.load %arg10[%c0_11, %c0_12] : memref<64x512xf32, #tpu.memory_space<vmem>>, vector<64x512xf32>
    tpu.vector_store %arg10[%c0_11, %c0_12], %11 {strides = array<i32>} : memref<64x512xf32, #tpu.memory_space<vmem>>, vector<64x512xf32>,
    %c0_i32_13 = arith.constant 0 : i32
    %c8_i32 = arith.constant 8 : i32
    %13 = arith.muli %arg1, %c8_i32 : i32
    %14 = arith.addi %13, %c0_i32_13 : i32
    %c0_14 = arith.constant 0 : index
    %c0_15 = arith.constant 0 : index
    %15 = vector.load %arg8[%c0_14, %c0_15] : memref<8x128xf32, #tpu.memory_space<vmem>>, vector<8x128xf32>
    %c0_16 = arith.constant 0 : index
    %c0_17 = arith.constant 0 : index
    %16 = vector.load %arg9[%c0_16, %c0_17] : memref<8x128xf32, #tpu.memory_space<vmem>>, vector<8x128xf32>
    %c8_i32_18 = arith.constant 8 : i32
    %17 = arith.muli %c0_i32_13, %c8_i32_18 : i32
    %18 = tpu.assume_multiple %17, 8 : i32
    %19 = arith.index_cast %18 : i32 to index
    %c0_19 = arith.constant 0 : index
    %20 = vector.load %arg10[%19, %c0_19] : memref<64x512xf32, #tpu.memory_space<vmem>>, vector<8x512xf32>
    %21 = arith.truncf %15 : vector<8x128xf32> to vector<8x128xbf16>
    %cst_20 = arith.constant dense<0.000000e+00> : vector<8x512xf32>
    %22 = tpu.matmul %21, %4, %cst_20 {dimension_numbers = #tpu.dot_dimension_numbers<[1], [0], [0], [1], [0, 0, 1, 1], [], []>} : vector<8x128xbf16>, vector<128x512xbf16>, vector<8x512xf32> -> vector<8x512xf32>
    %23 = arith.addf %20, %22 : vector<8x512xf32>
    %24 = vector.extract_strided_slice %23 {offsets = [0, 0], sizes = [8, 384], strides = [1, 1]} : vector<8x512xf32> to vector<8x384xf32>
    %25 = arith.negf %24 : vector<8x384xf32>
    %26 = math.exp %25 : vector<8x384xf32>
    %cst_21 = arith.constant 1.000000e+00 : f32
    %27 = vector.broadcast %cst_21 : f32 to vector<8x384xf32>
    %28 = arith.addf %27, %26 : vector<8x384xf32>
    %29 = arith.divf %27, %28 : vector<8x384xf32>
    %30 = vector.extract_strided_slice %29 {offsets = [0, 0], sizes = [8, 128], strides = [1, 1]} : vector<8x384xf32> to vector<8x128xf32>
    %31 = vector.extract_strided_slice %29 {offsets = [0, 128], sizes = [8, 128], strides = [1, 1]} : vector<8x384xf32> to vector<8x128xf32>
    %32 = vector.extract_strided_slice %29 {offsets = [0, 256], sizes = [8, 128], strides = [1, 1]} : vector<8x384xf32> to vector<8x128xf32>
    %33 = vector.extract_strided_slice %23 {offsets = [0, 384], sizes = [8, 128], strides = [1, 1]} : vector<8x512xf32> to vector<8x128xf32>
    %34 = math.tanh %33 : vector<8x128xf32>
    %35 = arith.mulf %31, %16 : vector<8x128xf32>
    %36 = arith.mulf %30, %34 : vector<8x128xf32>
    %37 = arith.addf %35, %36 : vector<8x128xf32>
    %38 = math.tanh %37 : vector<8x128xf32>
    %39 = arith.mulf %32, %38 : vector<8x128xf32>
    %40 = vector.broadcast %14 : i32 to vector<8x1xi32>
    %41 = arith.cmpi slt, %40, %3 : vector<8x1xi32>
    %42 = vector.shape_cast %41 : vector<8x1xi1> to vector<8x1xi1>
    %43 = vector.broadcast %42 : vector<8x1xi1> to vector<8x128xi1>
    %44 = arith.select %43, %37, %16 : vector<8x128xi1>, vector<8x128xf32>
    %c0_22 = arith.constant 0 : index
    %c0_23 = arith.constant 0 : index
    %45 = vector.load %arg9[%c0_22, %c0_23] : memref<8x128xf32, #tpu.memory_space<vmem>>, vector<8x128xf32>
    tpu.vector_store %arg9[%c0_22, %c0_23], %44 {strides = array<i32>} : memref<8x128xf32, #tpu.memory_space<vmem>>, vector<8x128xf32>,
    %46 = arith.select %43, %39, %15 : vector<8x128xi1>, vector<8x128xf32>
    %c0_24 = arith.constant 0 : index
    %c0_25 = arith.constant 0 : index
    %47 = vector.load %arg8[%c0_24, %c0_25] : memref<8x128xf32, #tpu.memory_space<vmem>>, vector<8x128xf32>
    tpu.vector_store %arg8[%c0_24, %c0_25], %46 {strides = array<i32>} : memref<8x128xf32, #tpu.memory_space<vmem>>, vector<8x128xf32>,
    %cst_26 = arith.constant 0.000000e+00 : f32
    %48 = vector.broadcast %cst_26 : f32 to vector<8x128xf32>
    %49 = arith.select %43, %39, %48 : vector<8x128xi1>, vector<8x128xf32>
    %50 = arith.index_cast %c0_i32_13 : i32 to index
    %c0_27 = arith.constant 0 : index
    %c0_28 = arith.constant 0 : index
    %51 = vector.load %arg7[%50, %c0_27, %c0_28] : memref<8x8x128xf32, #tpu.memory_space<vmem>>, vector<1x8x128xf32>
    %52 = vector.shape_cast %51 : vector<1x8x128xf32> to vector<8x128xf32>
    %53 = vector.shape_cast %49 : vector<8x128xf32> to vector<1x8x128xf32>
    tpu.vector_store %arg7[%50, %c0_27, %c0_28], %53 {strides = array<i32>} : memref<8x8x128xf32, #tpu.memory_space<vmem>>, vector<1x8x128xf32>,
    %c1_i32 = arith.constant 1 : i32
    %c8_i32_29 = arith.constant 8 : i32
    %54 = arith.muli %arg1, %c8_i32_29 : i32
    %55 = arith.addi %54, %c1_i32 : i32
    %c0_30 = arith.constant 0 : index
    %c0_31 = arith.constant 0 : index
    %56 = vector.load %arg8[%c0_30, %c0_31] : memref<8x128xf32, #tpu.memory_space<vmem>>, vector<8x128xf32>
    %c0_32 = arith.constant 0 : index
    %c0_33 = arith.constant 0 : index
    %57 = vector.load %arg9[%c0_32, %c0_33] : memref<8x128xf32, #tpu.memory_space<vmem>>, vector<8x128xf32>
    %c8_i32_34 = arith.constant 8 : i32
    %58 = arith.muli %c1_i32, %c8_i32_34 : i32
    %59 = tpu.assume_multiple %58, 8 : i32
    %60 = arith.index_cast %59 : i32 to index
    %c0_35 = arith.constant 0 : index
    %61 = vector.load %arg10[%60, %c0_35] : memref<64x512xf32, #tpu.memory_space<vmem>>, vector<8x512xf32>
    %62 = arith.truncf %56 : vector<8x128xf32> to vector<8x128xbf16>
    %cst_36 = arith.constant dense<0.000000e+00> : vector<8x512xf32>
    %63 = tpu.matmul %62, %4, %cst_36 {dimension_numbers = #tpu.dot_dimension_numbers<[1], [0], [0], [1], [0, 0, 1, 1], [], []>} : vector<8x128xbf16>, vector<128x512xbf16>, vector<8x512xf32> -> vector<8x512xf32>
    %64 = arith.addf %61, %63 : vector<8x512xf32>
    %65 = vector.extract_strided_slice %64 {offsets = [0, 0], sizes = [8, 384], strides = [1, 1]} : vector<8x512xf32> to vector<8x384xf32>
    %66 = arith.negf %65 : vector<8x384xf32>
    %67 = math.exp %66 : vector<8x384xf32>
    %cst_37 = arith.constant 1.000000e+00 : f32
    %68 = vector.broadcast %cst_37 : f32 to vector<8x384xf32>
    %69 = arith.addf %68, %67 : vector<8x384xf32>
    %70 = arith.divf %68, %69 : vector<8x384xf32>
    %71 = vector.extract_strided_slice %70 {offsets = [0, 0], sizes = [8, 128], strides = [1, 1]} : vector<8x384xf32> to vector<8x128xf32>
    %72 = vector.extract_strided_slice %70 {offsets = [0, 128], sizes = [8, 128], strides = [1, 1]} : vector<8x384xf32> to vector<8x128xf32>
    %73 = vector.extract_strided_slice %70 {offsets = [0, 256], sizes = [8, 128], strides = [1, 1]} : vector<8x384xf32> to vector<8x128xf32>
    %74 = vector.extract_strided_slice %64 {offsets = [0, 384], sizes = [8, 128], strides = [1, 1]} : vector<8x512xf32> to vector<8x128xf32>
    %75 = math.tanh %74 : vector<8x128xf32>
    %76 = arith.mulf %72, %57 : vector<8x128xf32>
    %77 = arith.mulf %71, %75 : vector<8x128xf32>
    %78 = arith.addf %76, %77 : vector<8x128xf32>
    %79 = math.tanh %78 : vector<8x128xf32>
    %80 = arith.mulf %73, %79 : vector<8x128xf32>
    %81 = vector.broadcast %55 : i32 to vector<8x1xi32>
    %82 = arith.cmpi slt, %81, %3 : vector<8x1xi32>
    %83 = vector.shape_cast %82 : vector<8x1xi1> to vector<8x1xi1>
    %84 = vector.broadcast %83 : vector<8x1xi1> to vector<8x128xi1>
    %85 = arith.select %84, %78, %57 : vector<8x128xi1>, vector<8x128xf32>
    %c0_38 = arith.constant 0 : index
    %c0_39 = arith.constant 0 : index
    %86 = vector.load %arg9[%c0_38, %c0_39] : memref<8x128xf32, #tpu.memory_space<vmem>>, vector<8x128xf32>
    tpu.vector_store %arg9[%c0_38, %c0_39], %85 {strides = array<i32>} : memref<8x128xf32, #tpu.memory_space<vmem>>, vector<8x128xf32>,
    %87 = arith.select %84, %80, %56 : vector<8x128xi1>, vector<8x128xf32>
    %c0_40 = arith.constant 0 : index
    %c0_41 = arith.constant 0 : index
    %88 = vector.load %arg8[%c0_40, %c0_41] : memref<8x128xf32, #tpu.memory_space<vmem>>, vector<8x128xf32>
    tpu.vector_store %arg8[%c0_40, %c0_41], %87 {strides = array<i32>} : memref<8x128xf32, #tpu.memory_space<vmem>>, vector<8x128xf32>,
    %cst_42 = arith.constant 0.000000e+00 : f32
    %89 = vector.broadcast %cst_42 : f32 to vector<8x128xf32>
    %90 = arith.select %84, %80, %89 : vector<8x128xi1>, vector<8x128xf32>
    %91 = arith.index_cast %c1_i32 : i32 to index
    %c0_43 = arith.constant 0 : index
    %c0_44 = arith.constant 0 : index
    %92 = vector.load %arg7[%91, %c0_43, %c0_44] : memref<8x8x128xf32, #tpu.memory_space<vmem>>, vector<1x8x128xf32>
    %93 = vector.shape_cast %92 : vector<1x8x128xf32> to vector<8x128xf32>
    %94 = vector.shape_cast %90 : vector<8x128xf32> to vector<1x8x128xf32>
    tpu.vector_store %arg7[%91, %c0_43, %c0_44], %94 {strides = array<i32>} : memref<8x8x128xf32, #tpu.memory_space<vmem>>, vector<1x8x128xf32>,
    %c2_i32 = arith.constant 2 : i32
    %c8_i32_45 = arith.constant 8 : i32
    %95 = arith.muli %arg1, %c8_i32_45 : i32
    %96 = arith.addi %95, %c2_i32 : i32
    %c0_46 = arith.constant 0 : index
    %c0_47 = arith.constant 0 : index
    %97 = vector.load %arg8[%c0_46, %c0_47] : memref<8x128xf32, #tpu.memory_space<vmem>>, vector<8x128xf32>
    %c0_48 = arith.constant 0 : index
    %c0_49 = arith.constant 0 : index
    %98 = vector.load %arg9[%c0_48, %c0_49] : memref<8x128xf32, #tpu.memory_space<vmem>>, vector<8x128xf32>
    %c8_i32_50 = arith.constant 8 : i32
    %99 = arith.muli %c2_i32, %c8_i32_50 : i32
    %100 = tpu.assume_multiple %99, 8 : i32
    %101 = arith.index_cast %100 : i32 to index
    %c0_51 = arith.constant 0 : index
    %102 = vector.load %arg10[%101, %c0_51] : memref<64x512xf32, #tpu.memory_space<vmem>>, vector<8x512xf32>
    %103 = arith.truncf %97 : vector<8x128xf32> to vector<8x128xbf16>
    %cst_52 = arith.constant dense<0.000000e+00> : vector<8x512xf32>
    %104 = tpu.matmul %103, %4, %cst_52 {dimension_numbers = #tpu.dot_dimension_numbers<[1], [0], [0], [1], [0, 0, 1, 1], [], []>} : vector<8x128xbf16>, vector<128x512xbf16>, vector<8x512xf32> -> vector<8x512xf32>
    %105 = arith.addf %102, %104 : vector<8x512xf32>
    %106 = vector.extract_strided_slice %105 {offsets = [0, 0], sizes = [8, 384], strides = [1, 1]} : vector<8x512xf32> to vector<8x384xf32>
    %107 = arith.negf %106 : vector<8x384xf32>
    %108 = math.exp %107 : vector<8x384xf32>
    %cst_53 = arith.constant 1.000000e+00 : f32
    %109 = vector.broadcast %cst_53 : f32 to vector<8x384xf32>
    %110 = arith.addf %109, %108 : vector<8x384xf32>
    %111 = arith.divf %109, %110 : vector<8x384xf32>
    %112 = vector.extract_strided_slice %111 {offsets = [0, 0], sizes = [8, 128], strides = [1, 1]} : vector<8x384xf32> to vector<8x128xf32>
    %113 = vector.extract_strided_slice %111 {offsets = [0, 128], sizes = [8, 128], strides = [1, 1]} : vector<8x384xf32> to vector<8x128xf32>
    %114 = vector.extract_strided_slice %111 {offsets = [0, 256], sizes = [8, 128], strides = [1, 1]} : vector<8x384xf32> to vector<8x128xf32>
    %115 = vector.extract_strided_slice %105 {offsets = [0, 384], sizes = [8, 128], strides = [1, 1]} : vector<8x512xf32> to vector<8x128xf32>
    %116 = math.tanh %115 : vector<8x128xf32>
    %117 = arith.mulf %113, %98 : vector<8x128xf32>
    %118 = arith.mulf %112, %116 : vector<8x128xf32>
    %119 = arith.addf %117, %118 : vector<8x128xf32>
    %120 = math.tanh %119 : vector<8x128xf32>
    %121 = arith.mulf %114, %120 : vector<8x128xf32>
    %122 = vector.broadcast %96 : i32 to vector<8x1xi32>
    %123 = arith.cmpi slt, %122, %3 : vector<8x1xi32>
    %124 = vector.shape_cast %123 : vector<8x1xi1> to vector<8x1xi1>
    %125 = vector.broadcast %124 : vector<8x1xi1> to vector<8x128xi1>
    %126 = arith.select %125, %119, %98 : vector<8x128xi1>, vector<8x128xf32>
    %c0_54 = arith.constant 0 : index
    %c0_55 = arith.constant 0 : index
    %127 = vector.load %arg9[%c0_54, %c0_55] : memref<8x128xf32, #tpu.memory_space<vmem>>, vector<8x128xf32>
    tpu.vector_store %arg9[%c0_54, %c0_55], %126 {strides = array<i32>} : memref<8x128xf32, #tpu.memory_space<vmem>>, vector<8x128xf32>,
    %128 = arith.select %125, %121, %97 : vector<8x128xi1>, vector<8x128xf32>
    %c0_56 = arith.constant 0 : index
    %c0_57 = arith.constant 0 : index
    %129 = vector.load %arg8[%c0_56, %c0_57] : memref<8x128xf32, #tpu.memory_space<vmem>>, vector<8x128xf32>
    tpu.vector_store %arg8[%c0_56, %c0_57], %128 {strides = array<i32>} : memref<8x128xf32, #tpu.memory_space<vmem>>, vector<8x128xf32>,
    %cst_58 = arith.constant 0.000000e+00 : f32
    %130 = vector.broadcast %cst_58 : f32 to vector<8x128xf32>
    %131 = arith.select %125, %121, %130 : vector<8x128xi1>, vector<8x128xf32>
    %132 = arith.index_cast %c2_i32 : i32 to index
    %c0_59 = arith.constant 0 : index
    %c0_60 = arith.constant 0 : index
    %133 = vector.load %arg7[%132, %c0_59, %c0_60] : memref<8x8x128xf32, #tpu.memory_space<vmem>>, vector<1x8x128xf32>
    %134 = vector.shape_cast %133 : vector<1x8x128xf32> to vector<8x128xf32>
    %135 = vector.shape_cast %131 : vector<8x128xf32> to vector<1x8x128xf32>
    tpu.vector_store %arg7[%132, %c0_59, %c0_60], %135 {strides = array<i32>} : memref<8x8x128xf32, #tpu.memory_space<vmem>>, vector<1x8x128xf32>,
    %c3_i32 = arith.constant 3 : i32
    %c8_i32_61 = arith.constant 8 : i32
    %136 = arith.muli %arg1, %c8_i32_61 : i32
    %137 = arith.addi %136, %c3_i32 : i32
    %c0_62 = arith.constant 0 : index
    %c0_63 = arith.constant 0 : index
    %138 = vector.load %arg8[%c0_62, %c0_63] : memref<8x128xf32, #tpu.memory_space<vmem>>, vector<8x128xf32>
    %c0_64 = arith.constant 0 : index
    %c0_65 = arith.constant 0 : index
    %139 = vector.load %arg9[%c0_64, %c0_65] : memref<8x128xf32, #tpu.memory_space<vmem>>, vector<8x128xf32>
    %c8_i32_66 = arith.constant 8 : i32
    %140 = arith.muli %c3_i32, %c8_i32_66 : i32
    %141 = tpu.assume_multiple %140, 8 : i32
    %142 = arith.index_cast %141 : i32 to index
    %c0_67 = arith.constant 0 : index
    %143 = vector.load %arg10[%142, %c0_67] : memref<64x512xf32, #tpu.memory_space<vmem>>, vector<8x512xf32>
    %144 = arith.truncf %138 : vector<8x128xf32> to vector<8x128xbf16>
    %cst_68 = arith.constant dense<0.000000e+00> : vector<8x512xf32>
    %145 = tpu.matmul %144, %4, %cst_68 {dimension_numbers = #tpu.dot_dimension_numbers<[1], [0], [0], [1], [0, 0, 1, 1], [], []>} : vector<8x128xbf16>, vector<128x512xbf16>, vector<8x512xf32> -> vector<8x512xf32>
    %146 = arith.addf %143, %145 : vector<8x512xf32>
    %147 = vector.extract_strided_slice %146 {offsets = [0, 0], sizes = [8, 384], strides = [1, 1]} : vector<8x512xf32> to vector<8x384xf32>
    %148 = arith.negf %147 : vector<8x384xf32>
    %149 = math.exp %148 : vector<8x384xf32>
    %cst_69 = arith.constant 1.000000e+00 : f32
    %150 = vector.broadcast %cst_69 : f32 to vector<8x384xf32>
    %151 = arith.addf %150, %149 : vector<8x384xf32>
    %152 = arith.divf %150, %151 : vector<8x384xf32>
    %153 = vector.extract_strided_slice %152 {offsets = [0, 0], sizes = [8, 128], strides = [1, 1]} : vector<8x384xf32> to vector<8x128xf32>
    %154 = vector.extract_strided_slice %152 {offsets = [0, 128], sizes = [8, 128], strides = [1, 1]} : vector<8x384xf32> to vector<8x128xf32>
    %155 = vector.extract_strided_slice %152 {offsets = [0, 256], sizes = [8, 128], strides = [1, 1]} : vector<8x384xf32> to vector<8x128xf32>
    %156 = vector.extract_strided_slice %146 {offsets = [0, 384], sizes = [8, 128], strides = [1, 1]} : vector<8x512xf32> to vector<8x128xf32>
    %157 = math.tanh %156 : vector<8x128xf32>
    %158 = arith.mulf %154, %139 : vector<8x128xf32>
    %159 = arith.mulf %153, %157 : vector<8x128xf32>
    %160 = arith.addf %158, %159 : vector<8x128xf32>
    %161 = math.tanh %160 : vector<8x128xf32>
    %162 = arith.mulf %155, %161 : vector<8x128xf32>
    %163 = vector.broadcast %137 : i32 to vector<8x1xi32>
    %164 = arith.cmpi slt, %163, %3 : vector<8x1xi32>
    %165 = vector.shape_cast %164 : vector<8x1xi1> to vector<8x1xi1>
    %166 = vector.broadcast %165 : vector<8x1xi1> to vector<8x128xi1>
    %167 = arith.select %166, %160, %139 : vector<8x128xi1>, vector<8x128xf32>
    %c0_70 = arith.constant 0 : index
    %c0_71 = arith.constant 0 : index
    %168 = vector.load %arg9[%c0_70, %c0_71] : memref<8x128xf32, #tpu.memory_space<vmem>>, vector<8x128xf32>
    tpu.vector_store %arg9[%c0_70, %c0_71], %167 {strides = array<i32>} : memref<8x128xf32, #tpu.memory_space<vmem>>, vector<8x128xf32>,
    %169 = arith.select %166, %162, %138 : vector<8x128xi1>, vector<8x128xf32>
    %c0_72 = arith.constant 0 : index
    %c0_73 = arith.constant 0 : index
    %170 = vector.load %arg8[%c0_72, %c0_73] : memref<8x128xf32, #tpu.memory_space<vmem>>, vector<8x128xf32>
    tpu.vector_store %arg8[%c0_72, %c0_73], %169 {strides = array<i32>} : memref<8x128xf32, #tpu.memory_space<vmem>>, vector<8x128xf32>,
    %cst_74 = arith.constant 0.000000e+00 : f32
    %171 = vector.broadcast %cst_74 : f32 to vector<8x128xf32>
    %172 = arith.select %166, %162, %171 : vector<8x128xi1>, vector<8x128xf32>
    %173 = arith.index_cast %c3_i32 : i32 to index
    %c0_75 = arith.constant 0 : index
    %c0_76 = arith.constant 0 : index
    %174 = vector.load %arg7[%173, %c0_75, %c0_76] : memref<8x8x128xf32, #tpu.memory_space<vmem>>, vector<1x8x128xf32>
    %175 = vector.shape_cast %174 : vector<1x8x128xf32> to vector<8x128xf32>
    %176 = vector.shape_cast %172 : vector<8x128xf32> to vector<1x8x128xf32>
    tpu.vector_store %arg7[%173, %c0_75, %c0_76], %176 {strides = array<i32>} : memref<8x8x128xf32, #tpu.memory_space<vmem>>, vector<1x8x128xf32>,
    %c4_i32 = arith.constant 4 : i32
    %c8_i32_77 = arith.constant 8 : i32
    %177 = arith.muli %arg1, %c8_i32_77 : i32
    %178 = arith.addi %177, %c4_i32 : i32
    %c0_78 = arith.constant 0 : index
    %c0_79 = arith.constant 0 : index
    %179 = vector.load %arg8[%c0_78, %c0_79] : memref<8x128xf32, #tpu.memory_space<vmem>>, vector<8x128xf32>
    %c0_80 = arith.constant 0 : index
    %c0_81 = arith.constant 0 : index
    %180 = vector.load %arg9[%c0_80, %c0_81] : memref<8x128xf32, #tpu.memory_space<vmem>>, vector<8x128xf32>
    %c8_i32_82 = arith.constant 8 : i32
    %181 = arith.muli %c4_i32, %c8_i32_82 : i32
    %182 = tpu.assume_multiple %181, 8 : i32
    %183 = arith.index_cast %182 : i32 to index
    %c0_83 = arith.constant 0 : index
    %184 = vector.load %arg10[%183, %c0_83] : memref<64x512xf32, #tpu.memory_space<vmem>>, vector<8x512xf32>
    %185 = arith.truncf %179 : vector<8x128xf32> to vector<8x128xbf16>
    %cst_84 = arith.constant dense<0.000000e+00> : vector<8x512xf32>
    %186 = tpu.matmul %185, %4, %cst_84 {dimension_numbers = #tpu.dot_dimension_numbers<[1], [0], [0], [1], [0, 0, 1, 1], [], []>} : vector<8x128xbf16>, vector<128x512xbf16>, vector<8x512xf32> -> vector<8x512xf32>
    %187 = arith.addf %184, %186 : vector<8x512xf32>
    %188 = vector.extract_strided_slice %187 {offsets = [0, 0], sizes = [8, 384], strides = [1, 1]} : vector<8x512xf32> to vector<8x384xf32>
    %189 = arith.negf %188 : vector<8x384xf32>
    %190 = math.exp %189 : vector<8x384xf32>
    %cst_85 = arith.constant 1.000000e+00 : f32
    %191 = vector.broadcast %cst_85 : f32 to vector<8x384xf32>
    %192 = arith.addf %191, %190 : vector<8x384xf32>
    %193 = arith.divf %191, %192 : vector<8x384xf32>
    %194 = vector.extract_strided_slice %193 {offsets = [0, 0], sizes = [8, 128], strides = [1, 1]} : vector<8x384xf32> to vector<8x128xf32>
    %195 = vector.extract_strided_slice %193 {offsets = [0, 128], sizes = [8, 128], strides = [1, 1]} : vector<8x384xf32> to vector<8x128xf32>
    %196 = vector.extract_strided_slice %193 {offsets = [0, 256], sizes = [8, 128], strides = [1, 1]} : vector<8x384xf32> to vector<8x128xf32>
    %197 = vector.extract_strided_slice %187 {offsets = [0, 384], sizes = [8, 128], strides = [1, 1]} : vector<8x512xf32> to vector<8x128xf32>
    %198 = math.tanh %197 : vector<8x128xf32>
    %199 = arith.mulf %195, %180 : vector<8x128xf32>
    %200 = arith.mulf %194, %198 : vector<8x128xf32>
    %201 = arith.addf %199, %200 : vector<8x128xf32>
    %202 = math.tanh %201 : vector<8x128xf32>
    %203 = arith.mulf %196, %202 : vector<8x128xf32>
    %204 = vector.broadcast %178 : i32 to vector<8x1xi32>
    %205 = arith.cmpi slt, %204, %3 : vector<8x1xi32>
    %206 = vector.shape_cast %205 : vector<8x1xi1> to vector<8x1xi1>
    %207 = vector.broadcast %206 : vector<8x1xi1> to vector<8x128xi1>
    %208 = arith.select %207, %201, %180 : vector<8x128xi1>, vector<8x128xf32>
    %c0_86 = arith.constant 0 : index
    %c0_87 = arith.constant 0 : index
    %209 = vector.load %arg9[%c0_86, %c0_87] : memref<8x128xf32, #tpu.memory_space<vmem>>, vector<8x128xf32>
    tpu.vector_store %arg9[%c0_86, %c0_87], %208 {strides = array<i32>} : memref<8x128xf32, #tpu.memory_space<vmem>>, vector<8x128xf32>,
    %210 = arith.select %207, %203, %179 : vector<8x128xi1>, vector<8x128xf32>
    %c0_88 = arith.constant 0 : index
    %c0_89 = arith.constant 0 : index
    %211 = vector.load %arg8[%c0_88, %c0_89] : memref<8x128xf32, #tpu.memory_space<vmem>>, vector<8x128xf32>
    tpu.vector_store %arg8[%c0_88, %c0_89], %210 {strides = array<i32>} : memref<8x128xf32, #tpu.memory_space<vmem>>, vector<8x128xf32>,
    %cst_90 = arith.constant 0.000000e+00 : f32
    %212 = vector.broadcast %cst_90 : f32 to vector<8x128xf32>
    %213 = arith.select %207, %203, %212 : vector<8x128xi1>, vector<8x128xf32>
    %214 = arith.index_cast %c4_i32 : i32 to index
    %c0_91 = arith.constant 0 : index
    %c0_92 = arith.constant 0 : index
    %215 = vector.load %arg7[%214, %c0_91, %c0_92] : memref<8x8x128xf32, #tpu.memory_space<vmem>>, vector<1x8x128xf32>
    %216 = vector.shape_cast %215 : vector<1x8x128xf32> to vector<8x128xf32>
    %217 = vector.shape_cast %213 : vector<8x128xf32> to vector<1x8x128xf32>
    tpu.vector_store %arg7[%214, %c0_91, %c0_92], %217 {strides = array<i32>} : memref<8x8x128xf32, #tpu.memory_space<vmem>>, vector<1x8x128xf32>,
    %c5_i32 = arith.constant 5 : i32
    %c8_i32_93 = arith.constant 8 : i32
    %218 = arith.muli %arg1, %c8_i32_93 : i32
    %219 = arith.addi %218, %c5_i32 : i32
    %c0_94 = arith.constant 0 : index
    %c0_95 = arith.constant 0 : index
    %220 = vector.load %arg8[%c0_94, %c0_95] : memref<8x128xf32, #tpu.memory_space<vmem>>, vector<8x128xf32>
    %c0_96 = arith.constant 0 : index
    %c0_97 = arith.constant 0 : index
    %221 = vector.load %arg9[%c0_96, %c0_97] : memref<8x128xf32, #tpu.memory_space<vmem>>, vector<8x128xf32>
    %c8_i32_98 = arith.constant 8 : i32
    %222 = arith.muli %c5_i32, %c8_i32_98 : i32
    %223 = tpu.assume_multiple %222, 8 : i32
    %224 = arith.index_cast %223 : i32 to index
    %c0_99 = arith.constant 0 : index
    %225 = vector.load %arg10[%224, %c0_99] : memref<64x512xf32, #tpu.memory_space<vmem>>, vector<8x512xf32>
    %226 = arith.truncf %220 : vector<8x128xf32> to vector<8x128xbf16>
    %cst_100 = arith.constant dense<0.000000e+00> : vector<8x512xf32>
    %227 = tpu.matmul %226, %4, %cst_100 {dimension_numbers = #tpu.dot_dimension_numbers<[1], [0], [0], [1], [0, 0, 1, 1], [], []>} : vector<8x128xbf16>, vector<128x512xbf16>, vector<8x512xf32> -> vector<8x512xf32>
    %228 = arith.addf %225, %227 : vector<8x512xf32>
    %229 = vector.extract_strided_slice %228 {offsets = [0, 0], sizes = [8, 384], strides = [1, 1]} : vector<8x512xf32> to vector<8x384xf32>
    %230 = arith.negf %229 : vector<8x384xf32>
    %231 = math.exp %230 : vector<8x384xf32>
    %cst_101 = arith.constant 1.000000e+00 : f32
    %232 = vector.broadcast %cst_101 : f32 to vector<8x384xf32>
    %233 = arith.addf %232, %231 : vector<8x384xf32>
    %234 = arith.divf %232, %233 : vector<8x384xf32>
    %235 = vector.extract_strided_slice %234 {offsets = [0, 0], sizes = [8, 128], strides = [1, 1]} : vector<8x384xf32> to vector<8x128xf32>
    %236 = vector.extract_strided_slice %234 {offsets = [0, 128], sizes = [8, 128], strides = [1, 1]} : vector<8x384xf32> to vector<8x128xf32>
    %237 = vector.extract_strided_slice %234 {offsets = [0, 256], sizes = [8, 128], strides = [1, 1]} : vector<8x384xf32> to vector<8x128xf32>
    %238 = vector.extract_strided_slice %228 {offsets = [0, 384], sizes = [8, 128], strides = [1, 1]} : vector<8x512xf32> to vector<8x128xf32>
    %239 = math.tanh %238 : vector<8x128xf32>
    %240 = arith.mulf %236, %221 : vector<8x128xf32>
    %241 = arith.mulf %235, %239 : vector<8x128xf32>
    %242 = arith.addf %240, %241 : vector<8x128xf32>
    %243 = math.tanh %242 : vector<8x128xf32>
    %244 = arith.mulf %237, %243 : vector<8x128xf32>
    %245 = vector.broadcast %219 : i32 to vector<8x1xi32>
    %246 = arith.cmpi slt, %245, %3 : vector<8x1xi32>
    %247 = vector.shape_cast %246 : vector<8x1xi1> to vector<8x1xi1>
    %248 = vector.broadcast %247 : vector<8x1xi1> to vector<8x128xi1>
    %249 = arith.select %248, %242, %221 : vector<8x128xi1>, vector<8x128xf32>
    %c0_102 = arith.constant 0 : index
    %c0_103 = arith.constant 0 : index
    %250 = vector.load %arg9[%c0_102, %c0_103] : memref<8x128xf32, #tpu.memory_space<vmem>>, vector<8x128xf32>
    tpu.vector_store %arg9[%c0_102, %c0_103], %249 {strides = array<i32>} : memref<8x128xf32, #tpu.memory_space<vmem>>, vector<8x128xf32>,
    %251 = arith.select %248, %244, %220 : vector<8x128xi1>, vector<8x128xf32>
    %c0_104 = arith.constant 0 : index
    %c0_105 = arith.constant 0 : index
    %252 = vector.load %arg8[%c0_104, %c0_105] : memref<8x128xf32, #tpu.memory_space<vmem>>, vector<8x128xf32>
    tpu.vector_store %arg8[%c0_104, %c0_105], %251 {strides = array<i32>} : memref<8x128xf32, #tpu.memory_space<vmem>>, vector<8x128xf32>,
    %cst_106 = arith.constant 0.000000e+00 : f32
    %253 = vector.broadcast %cst_106 : f32 to vector<8x128xf32>
    %254 = arith.select %248, %244, %253 : vector<8x128xi1>, vector<8x128xf32>
    %255 = arith.index_cast %c5_i32 : i32 to index
    %c0_107 = arith.constant 0 : index
    %c0_108 = arith.constant 0 : index
    %256 = vector.load %arg7[%255, %c0_107, %c0_108] : memref<8x8x128xf32, #tpu.memory_space<vmem>>, vector<1x8x128xf32>
    %257 = vector.shape_cast %256 : vector<1x8x128xf32> to vector<8x128xf32>
    %258 = vector.shape_cast %254 : vector<8x128xf32> to vector<1x8x128xf32>
    tpu.vector_store %arg7[%255, %c0_107, %c0_108], %258 {strides = array<i32>} : memref<8x8x128xf32, #tpu.memory_space<vmem>>, vector<1x8x128xf32>,
    %c6_i32 = arith.constant 6 : i32
    %c8_i32_109 = arith.constant 8 : i32
    %259 = arith.muli %arg1, %c8_i32_109 : i32
    %260 = arith.addi %259, %c6_i32 : i32
    %c0_110 = arith.constant 0 : index
    %c0_111 = arith.constant 0 : index
    %261 = vector.load %arg8[%c0_110, %c0_111] : memref<8x128xf32, #tpu.memory_space<vmem>>, vector<8x128xf32>
    %c0_112 = arith.constant 0 : index
    %c0_113 = arith.constant 0 : index
    %262 = vector.load %arg9[%c0_112, %c0_113] : memref<8x128xf32, #tpu.memory_space<vmem>>, vector<8x128xf32>
    %c8_i32_114 = arith.constant 8 : i32
    %263 = arith.muli %c6_i32, %c8_i32_114 : i32
    %264 = tpu.assume_multiple %263, 8 : i32
    %265 = arith.index_cast %264 : i32 to index
    %c0_115 = arith.constant 0 : index
    %266 = vector.load %arg10[%265, %c0_115] : memref<64x512xf32, #tpu.memory_space<vmem>>, vector<8x512xf32>
    %267 = arith.truncf %261 : vector<8x128xf32> to vector<8x128xbf16>
    %cst_116 = arith.constant dense<0.000000e+00> : vector<8x512xf32>
    %268 = tpu.matmul %267, %4, %cst_116 {dimension_numbers = #tpu.dot_dimension_numbers<[1], [0], [0], [1], [0, 0, 1, 1], [], []>} : vector<8x128xbf16>, vector<128x512xbf16>, vector<8x512xf32> -> vector<8x512xf32>
    %269 = arith.addf %266, %268 : vector<8x512xf32>
    %270 = vector.extract_strided_slice %269 {offsets = [0, 0], sizes = [8, 384], strides = [1, 1]} : vector<8x512xf32> to vector<8x384xf32>
    %271 = arith.negf %270 : vector<8x384xf32>
    %272 = math.exp %271 : vector<8x384xf32>
    %cst_117 = arith.constant 1.000000e+00 : f32
    %273 = vector.broadcast %cst_117 : f32 to vector<8x384xf32>
    %274 = arith.addf %273, %272 : vector<8x384xf32>
    %275 = arith.divf %273, %274 : vector<8x384xf32>
    %276 = vector.extract_strided_slice %275 {offsets = [0, 0], sizes = [8, 128], strides = [1, 1]} : vector<8x384xf32> to vector<8x128xf32>
    %277 = vector.extract_strided_slice %275 {offsets = [0, 128], sizes = [8, 128], strides = [1, 1]} : vector<8x384xf32> to vector<8x128xf32>
    %278 = vector.extract_strided_slice %275 {offsets = [0, 256], sizes = [8, 128], strides = [1, 1]} : vector<8x384xf32> to vector<8x128xf32>
    %279 = vector.extract_strided_slice %269 {offsets = [0, 384], sizes = [8, 128], strides = [1, 1]} : vector<8x512xf32> to vector<8x128xf32>
    %280 = math.tanh %279 : vector<8x128xf32>
    %281 = arith.mulf %277, %262 : vector<8x128xf32>
    %282 = arith.mulf %276, %280 : vector<8x128xf32>
    %283 = arith.addf %281, %282 : vector<8x128xf32>
    %284 = math.tanh %283 : vector<8x128xf32>
    %285 = arith.mulf %278, %284 : vector<8x128xf32>
    %286 = vector.broadcast %260 : i32 to vector<8x1xi32>
    %287 = arith.cmpi slt, %286, %3 : vector<8x1xi32>
    %288 = vector.shape_cast %287 : vector<8x1xi1> to vector<8x1xi1>
    %289 = vector.broadcast %288 : vector<8x1xi1> to vector<8x128xi1>
    %290 = arith.select %289, %283, %262 : vector<8x128xi1>, vector<8x128xf32>
    %c0_118 = arith.constant 0 : index
    %c0_119 = arith.constant 0 : index
    %291 = vector.load %arg9[%c0_118, %c0_119] : memref<8x128xf32, #tpu.memory_space<vmem>>, vector<8x128xf32>
    tpu.vector_store %arg9[%c0_118, %c0_119], %290 {strides = array<i32>} : memref<8x128xf32, #tpu.memory_space<vmem>>, vector<8x128xf32>,
    %292 = arith.select %289, %285, %261 : vector<8x128xi1>, vector<8x128xf32>
    %c0_120 = arith.constant 0 : index
    %c0_121 = arith.constant 0 : index
    %293 = vector.load %arg8[%c0_120, %c0_121] : memref<8x128xf32, #tpu.memory_space<vmem>>, vector<8x128xf32>
    tpu.vector_store %arg8[%c0_120, %c0_121], %292 {strides = array<i32>} : memref<8x128xf32, #tpu.memory_space<vmem>>, vector<8x128xf32>,
    %cst_122 = arith.constant 0.000000e+00 : f32
    %294 = vector.broadcast %cst_122 : f32 to vector<8x128xf32>
    %295 = arith.select %289, %285, %294 : vector<8x128xi1>, vector<8x128xf32>
    %296 = arith.index_cast %c6_i32 : i32 to index
    %c0_123 = arith.constant 0 : index
    %c0_124 = arith.constant 0 : index
    %297 = vector.load %arg7[%296, %c0_123, %c0_124] : memref<8x8x128xf32, #tpu.memory_space<vmem>>, vector<1x8x128xf32>
    %298 = vector.shape_cast %297 : vector<1x8x128xf32> to vector<8x128xf32>
    %299 = vector.shape_cast %295 : vector<8x128xf32> to vector<1x8x128xf32>
    tpu.vector_store %arg7[%296, %c0_123, %c0_124], %299 {strides = array<i32>} : memref<8x8x128xf32, #tpu.memory_space<vmem>>, vector<1x8x128xf32>,
    %c7_i32 = arith.constant 7 : i32
    %c8_i32_125 = arith.constant 8 : i32
    %300 = arith.muli %arg1, %c8_i32_125 : i32
    %301 = arith.addi %300, %c7_i32 : i32
    %c0_126 = arith.constant 0 : index
    %c0_127 = arith.constant 0 : index
    %302 = vector.load %arg8[%c0_126, %c0_127] : memref<8x128xf32, #tpu.memory_space<vmem>>, vector<8x128xf32>
    %c0_128 = arith.constant 0 : index
    %c0_129 = arith.constant 0 : index
    %303 = vector.load %arg9[%c0_128, %c0_129] : memref<8x128xf32, #tpu.memory_space<vmem>>, vector<8x128xf32>
    %c8_i32_130 = arith.constant 8 : i32
    %304 = arith.muli %c7_i32, %c8_i32_130 : i32
    %305 = tpu.assume_multiple %304, 8 : i32
    %306 = arith.index_cast %305 : i32 to index
    %c0_131 = arith.constant 0 : index
    %307 = vector.load %arg10[%306, %c0_131] : memref<64x512xf32, #tpu.memory_space<vmem>>, vector<8x512xf32>
    %308 = arith.truncf %302 : vector<8x128xf32> to vector<8x128xbf16>
    %cst_132 = arith.constant dense<0.000000e+00> : vector<8x512xf32>
    %309 = tpu.matmul %308, %4, %cst_132 {dimension_numbers = #tpu.dot_dimension_numbers<[1], [0], [0], [1], [0, 0, 1, 1], [], []>} : vector<8x128xbf16>, vector<128x512xbf16>, vector<8x512xf32> -> vector<8x512xf32>
    %310 = arith.addf %307, %309 : vector<8x512xf32>
    %311 = vector.extract_strided_slice %310 {offsets = [0, 0], sizes = [8, 384], strides = [1, 1]} : vector<8x512xf32> to vector<8x384xf32>
    %312 = arith.negf %311 : vector<8x384xf32>
    %313 = math.exp %312 : vector<8x384xf32>
    %cst_133 = arith.constant 1.000000e+00 : f32
    %314 = vector.broadcast %cst_133 : f32 to vector<8x384xf32>
    %315 = arith.addf %314, %313 : vector<8x384xf32>
    %316 = arith.divf %314, %315 : vector<8x384xf32>
    %317 = vector.extract_strided_slice %316 {offsets = [0, 0], sizes = [8, 128], strides = [1, 1]} : vector<8x384xf32> to vector<8x128xf32>
    %318 = vector.extract_strided_slice %316 {offsets = [0, 128], sizes = [8, 128], strides = [1, 1]} : vector<8x384xf32> to vector<8x128xf32>
    %319 = vector.extract_strided_slice %316 {offsets = [0, 256], sizes = [8, 128], strides = [1, 1]} : vector<8x384xf32> to vector<8x128xf32>
    %320 = vector.extract_strided_slice %310 {offsets = [0, 384], sizes = [8, 128], strides = [1, 1]} : vector<8x512xf32> to vector<8x128xf32>
    %321 = math.tanh %320 : vector<8x128xf32>
    %322 = arith.mulf %318, %303 : vector<8x128xf32>
    %323 = arith.mulf %317, %321 : vector<8x128xf32>
    %324 = arith.addf %322, %323 : vector<8x128xf32>
    %325 = math.tanh %324 : vector<8x128xf32>
    %326 = arith.mulf %319, %325 : vector<8x128xf32>
    %327 = vector.broadcast %301 : i32 to vector<8x1xi32>
    %328 = arith.cmpi slt, %327, %3 : vector<8x1xi32>
    %329 = vector.shape_cast %328 : vector<8x1xi1> to vector<8x1xi1>
    %330 = vector.broadcast %329 : vector<8x1xi1> to vector<8x128xi1>
    %331 = arith.select %330, %324, %303 : vector<8x128xi1>, vector<8x128xf32>
    %c0_134 = arith.constant 0 : index
    %c0_135 = arith.constant 0 : index
    %332 = vector.load %arg9[%c0_134, %c0_135] : memref<8x128xf32, #tpu.memory_space<vmem>>, vector<8x128xf32>
    tpu.vector_store %arg9[%c0_134, %c0_135], %331 {strides = array<i32>} : memref<8x128xf32, #tpu.memory_space<vmem>>, vector<8x128xf32>,
    %333 = arith.select %330, %326, %302 : vector<8x128xi1>, vector<8x128xf32>
    %c0_136 = arith.constant 0 : index
    %c0_137 = arith.constant 0 : index
    %334 = vector.load %arg8[%c0_136, %c0_137] : memref<8x128xf32, #tpu.memory_space<vmem>>, vector<8x128xf32>
    tpu.vector_store %arg8[%c0_136, %c0_137], %333 {strides = array<i32>} : memref<8x128xf32, #tpu.memory_space<vmem>>, vector<8x128xf32>,
    %cst_138 = arith.constant 0.000000e+00 : f32
    %335 = vector.broadcast %cst_138 : f32 to vector<8x128xf32>
    %336 = arith.select %330, %326, %335 : vector<8x128xi1>, vector<8x128xf32>
    %337 = arith.index_cast %c7_i32 : i32 to index
    %c0_139 = arith.constant 0 : index
    %c0_140 = arith.constant 0 : index
    %338 = vector.load %arg7[%337, %c0_139, %c0_140] : memref<8x8x128xf32, #tpu.memory_space<vmem>>, vector<1x8x128xf32>
    %339 = vector.shape_cast %338 : vector<1x8x128xf32> to vector<8x128xf32>
    %340 = vector.shape_cast %336 : vector<8x128xf32> to vector<1x8x128xf32>
    tpu.vector_store %arg7[%337, %c0_139, %c0_140], %340 {strides = array<i32>} : memref<8x8x128xf32, #tpu.memory_space<vmem>>, vector<1x8x128xf32>,
    %c8_i32_141 = arith.constant 8 : i32
    return
  }
  func.func @transform_0(%arg0: i32, %arg1: i32) -> (i32, i32, i32) {
    %c0_i32 = arith.constant 0 : i32
    %c0_i32_0 = arith.constant 0 : i32
    return %arg1, %arg0, %c0_i32 : i32, i32, i32
  }
  func.func @transform_1(%arg0: i32, %arg1: i32) -> (i32, i32) {
    %c0_i32 = arith.constant 0 : i32
    %c0_i32_0 = arith.constant 0 : i32
    return %arg0, %c0_i32 : i32, i32
  }
  func.func @transform_2(%arg0: i32, %arg1: i32) -> (i32, i32) {
    %c0_i32 = arith.constant 0 : i32
    %c0_i32_0 = arith.constant 0 : i32
    %c0_i32_1 = arith.constant 0 : i32
    return %c0_i32, %c0_i32_0 : i32, i32
  }
  func.func @transform_3(%arg0: i32, %arg1: i32) -> (i32, i32) {
    %c0_i32 = arith.constant 0 : i32
    %c0_i32_0 = arith.constant 0 : i32
    %c0_i32_1 = arith.constant 0 : i32
    return %c0_i32, %c0_i32_0 : i32, i32
  }
  func.func @transform_4(%arg0: i32, %arg1: i32) -> (i32, i32) {
    %c0_i32 = arith.constant 0 : i32
    %c0_i32_0 = arith.constant 0 : i32
    %c0_i32_1 = arith.constant 0 : i32
    return %c0_i32, %c0_i32_0 : i32, i32
  }
  func.func @transform_5(%arg0: i32, %arg1: i32) -> (i32, i32, i32) {
    %c0_i32 = arith.constant 0 : i32
    %c0_i32_0 = arith.constant 0 : i32
    return %arg1, %arg0, %c0_i32 : i32, i32, i32
  }
  func.func @transform_6(%arg0: i32, %arg1: i32) -> (i32, i32) {
    %c0_i32 = arith.constant 0 : i32
    %c0_i32_0 = arith.constant 0 : i32
    return %arg0, %c0_i32 : i32, i32
  }
  func.func @transform_7(%arg0: i32, %arg1: i32) -> (i32, i32) {
    %c0_i32 = arith.constant 0 : i32
    %c0_i32_0 = arith.constant 0 : i32
    return %arg0, %c0_i32 : i32, i32
  }
}

</mosaic_0001>

<llo_original>
// kernel: lstm_event_specific_pack.1
$region0: #{lstm_event_specific_pack.1}
  #allocation0 [shape = 'u32[]', space=smem, size = 0x4, offset = 0x4, fixed_abs, tag = 'smem constant byte address 0x4 - core index']
  #allocation1 [shape = 'u32[144,128]{1,0:T(1,128)}', space=vmem, size = 0x12000, scoped, tag = 'internal scratch']
  #allocation2 [shape = 'f32[64,512]{1,0:T(8,128)}', space=vmem, size = 0x20000, scoped, tag = 'scratch operand']
  %s0 = inlined_call_operand.vmem [shape: bf16[8,8,128], index: 0, kind: input, shape index: {}]
  %s1 = inlined_call_operand.vmem [shape: s32[8,1], index: 1, kind: input, shape index: {}]
  %s2 = inlined_call_operand.vmem [shape: bf16[128,512], index: 2, kind: input, shape index: {}]
  %s3 = inlined_call_operand.vmem [shape: bf16[128,512], index: 3, kind: input, shape index: {}]
  %s4 = inlined_call_operand.vmem [shape: f32[1,512], index: 4, kind: input, shape index: {}]
  %s5 = inlined_call_operand.vmem [shape: f32[8,8,128], index: 5, kind: output, shape index: {0}]
  %s6 = inlined_call_operand.vmem [shape: f32[8,128], index: 6, kind: output, shape index: {1}]
  %s7 = inlined_call_operand.vmem [shape: f32[8,128], index: 7, kind: output, shape index: {2}]
  %8 = xla_tuple %s5, %s6, %s7
  %s9 = sld [smem:[#allocation0]]
  $region50: #{lstm_event_specific_pack.1} parent=0
    _
  %s11 = ssub.s32 1, %s9
  %s12 = scalar_select 0, %s11, %s9
  // Predicated region
  $region2: #{lstm_event_specific_pack.1} parent=0 // pred_check
    _
  $region3: #{lstm_event_specific_pack.1} parent=0 // pred_check_branch
    %14 = sbr.rel (0) target = $region5
  $region4: #{lstm_event_specific_pack.1} parent=0 // pred_region
    _
  $region5: #{lstm_event_specific_pack.1} parent=0 // pred_fallthru
    _
  // Predicated region
  $region6: #{lstm_event_specific_pack.1} parent=0 // pred_check
    _
  $region7: #{lstm_event_specific_pack.1} parent=0 // pred_check_branch
    %16 = sbr.rel (0) target = $region9
  $region8: #{lstm_event_specific_pack.1} parent=0 // pred_region
    _
  $region9: #{lstm_event_specific_pack.1} parent=0 // pred_fallthru
    _
  // Predicated region
  $region10: #{lstm_event_specific_pack.1} parent=0 // pred_check
    _
  $region11: #{lstm_event_specific_pack.1} parent=0 // pred_check_branch
    %18 = sbr.rel (0) target = $region13
  $region12: #{lstm_event_specific_pack.1} parent=0 // pred_region
    _
  $region13: #{lstm_event_specific_pack.1} parent=0 // pred_fallthru
    _
  // Predicated region
  $region14: #{lstm_event_specific_pack.1} parent=0 // pred_check
    _
  $region15: #{lstm_event_specific_pack.1} parent=0 // pred_check_branch
    %20 = sbr.rel (0) target = $region17
  $region16: #{lstm_event_specific_pack.1} parent=0 // pred_region
    _
  $region17: #{lstm_event_specific_pack.1} parent=0 // pred_fallthru
    _
  // Predicated region
  $region18: #{lstm_event_specific_pack.1} parent=0 // pred_check
    _
  $region19: #{lstm_event_specific_pack.1} parent=0 // pred_check_branch
    %22 = sbr.rel (0) target = $region21
  $region20: #{lstm_event_specific_pack.1} parent=0 // pred_region
    _
  $region21: #{lstm_event_specific_pack.1} parent=0 // pred_fallthru
    _
  %p24 = scmp.eq.s32.totalorder 0, 0
  // Predicated region
  $region22: #{lstm_event_specific_pack.1} parent=0 // pred_check
    %p25 = pneg %p24
  $region23: #{lstm_event_specific_pack.1} parent=0 // pred_check_branch
    %27 = sbr.rel (%p25) target = $region25
  $region24: #{lstm_event_specific_pack.1} parent=0 // pred_region
    %28 = vst [vmem:[%s6] sm:$0xff] 0.0
    %29 = vst [vmem:[%s7] sm:$0xff] 0.0
  $region25: #{lstm_event_specific_pack.1} parent=0 // pred_fallthru
    _
  %v30 = vld [vmem:[%s1] sm:$0xff]
  %v31 = vld [vmem:[%s3] sm:$0xff]
  %v32 = vld [vmem:[%s3 + $0x8] sm:$0xff]
  %v33 = vld [vmem:[%s3 + $0x10] sm:$0xff]
  %v34 = vld [vmem:[%s3 + $0x18] sm:$0xff]
  %v35 = vld [vmem:[%s3 + $0x20] sm:$0xff]
  %v36 = vld [vmem:[%s3 + $0x28] sm:$0xff]
  %v37 = vld [vmem:[%s3 + $0x30] sm:$0xff]
  %v38 = vld [vmem:[%s3 + $0x38] sm:$0xff]
  %v39 = vld [vmem:[%s3 + $0x40] sm:$0xff]
  %v40 = vld [vmem:[%s3 + $0x48] sm:$0xff]
  %v41 = vld [vmem:[%s3 + $0x50] sm:$0xff]
  %v42 = vld [vmem:[%s3 + $0x58] sm:$0xff]
  %v43 = vld [vmem:[%s3 + $0x60] sm:$0xff]
  %v44 = vld [vmem:[%s3 + $0x68] sm:$0xff]
  %v45 = vld [vmem:[%s3 + $0x70] sm:$0xff]
  %v46 = vld [vmem:[%s3 + $0x78] sm:$0xff]
  %v47 = vld [vmem:[%s3 + $0x80] sm:$0xff]
  %v48 = vld [vmem:[%s3 + $0x88] sm:$0xff]
  %v49 = vld [vmem:[%s3 + $0x90] sm:$0xff]
  %v50 = vld [vmem:[%s3 + $0x98] sm:$0xff]
  %v51 = vld [vmem:[%s3 + $0xa0] sm:$0xff]
  %v52 = vld [vmem:[%s3 + $0xa8] sm:$0xff]
  %v53 = vld [vmem:[%s3 + $0xb0] sm:$0xff]
  %v54 = vld [vmem:[%s3 + $0xb8] sm:$0xff]
  %v55 = vld [vmem:[%s3 + $0xc0] sm:$0xff]
  %v56 = vld [vmem:[%s3 + $0xc8] sm:$0xff]
  %v57 = vld [vmem:[%s3 + $0xd0] sm:$0xff]
  %v58 = vld [vmem:[%s3 + $0xd8] sm:$0xff]
  %v59 = vld [vmem:[%s3 + $0xe0] sm:$0xff]
  %v60 = vld [vmem:[%s3 + $0xe8] sm:$0xff]
  %v61 = vld [vmem:[%s3 + $0xf0] sm:$0xff]
  %v62 = vld [vmem:[%s3 + $0xf8] sm:$0xff]
  %v63 = vld [vmem:[%s0] sm:$0xf]
  %v64 = vld [vmem:[%s0 + $0x4] sm:$0xf]
  %v65 = vld [vmem:[%s0 + $0x8] sm:$0xf]
  %v66 = vld [vmem:[%s0 + $0xc] sm:$0xf]
  %v67 = vld [vmem:[%s0 + $0x10] sm:$0xf]
  %v68 = vld [vmem:[%s0 + $0x14] sm:$0xf]
  %v69 = vld [vmem:[%s0 + $0x18] sm:$0xf]
  %v70 = vld [vmem:[%s0 + $0x1c] sm:$0xf]
  %v71 = vld [vmem:[%s2] sm:$0xff]
  %v72 = vld [vmem:[%s2 + $0x8] sm:$0xff]
  %v73 = vld [vmem:[%s2 + $0x10] sm:$0xff]
  %v74 = vld [vmem:[%s2 + $0x18] sm:$0xff]
  %v75 = vld [vmem:[%s2 + $0x20] sm:$0xff]
  %v76 = vld [vmem:[%s2 + $0x28] sm:$0xff]
  %v77 = vld [vmem:[%s2 + $0x30] sm:$0xff]
  %v78 = vld [vmem:[%s2 + $0x38] sm:$0xff]
  %v79 = vld [vmem:[%s2 + $0x40] sm:$0xff]
  %v80 = vld [vmem:[%s2 + $0x48] sm:$0xff]
  %v81 = vld [vmem:[%s2 + $0x50] sm:$0xff]
  %v82 = vld [vmem:[%s2 + $0x58] sm:$0xff]
  %v83 = vld [vmem:[%s2 + $0x60] sm:$0xff]
  %v84 = vld [vmem:[%s2 + $0x68] sm:$0xff]
  %v85 = vld [vmem:[%s2 + $0x70] sm:$0xff]
  %v86 = vld [vmem:[%s2 + $0x78] sm:$0xff]
  %v87 = vld [vmem:[%s2 + $0x80] sm:$0xff]
  %v88 = vld [vmem:[%s2 + $0x88] sm:$0xff]
  %v89 = vld [vmem:[%s2 + $0x90] sm:$0xff]
  %v90 = vld [vmem:[%s2 + $0x98] sm:$0xff]
  %v91 = vld [vmem:[%s2 + $0xa0] sm:$0xff]
  %v92 = vld [vmem:[%s2 + $0xa8] sm:$0xff]
  %v93 = vld [vmem:[%s2 + $0xb0] sm:$0xff]
  %v94 = vld [vmem:[%s2 + $0xb8] sm:$0xff]
  %v95 = vld [vmem:[%s2 + $0xc0] sm:$0xff]
  %v96 = vld [vmem:[%s2 + $0xc8] sm:$0xff]
  %v97 = vld [vmem:[%s2 + $0xd0] sm:$0xff]
  %v98 = vld [vmem:[%s2 + $0xd8] sm:$0xff]
  %v99 = vld [vmem:[%s2 + $0xe0] sm:$0xff]
  %v100 = vld [vmem:[%s2 + $0xe8] sm:$0xff]
  %v101 = vld [vmem:[%s2 + $0xf0] sm:$0xff]
  %v102 = vld [vmem:[%s2 + $0xf8] sm:$0xff]
  %v103 = vld [vmem:[%s4] sm:$0xf]
  %v105 = vlaneseq
  %v106 = vshrl.u32 %v105, 7
  %v107 = vsub.s32 0, %v106
  %v108 = vrot.slane %v103, %v107
  %v109 = vlaneseq
  %v110 = vshrl.u32 %v109, 7
  %v111 = vsub.s32 1, %v110
  %v112 = vrot.slane %v103, %v111
  %v113 = vlaneseq
  %v114 = vshrl.u32 %v113, 7
  %v115 = vsub.s32 2, %v114
  %v116 = vrot.slane %v103, %v115
  %v117 = vlaneseq
  %v118 = vshrl.u32 %v117, 7
  %v119 = vsub.s32 3, %v118
  %v120 = vrot.slane %v103, %v119
  %v133 = vunpack.c.l.b16 %v63
  %v134 = vunpack.c.l.b16 %v64
  %v135 = vunpack.c.l.b16 %v65
  %v136 = vunpack.c.l.b16 %v66
  %v137 = vunpack.c.l.b16 %v67
  %v138 = vunpack.c.l.b16 %v68
  %v139 = vunpack.c.l.b16 %v69
  %v140 = vunpack.c.l.b16 %v70
  %v141 = vpack.c.b16 %v134, %v133
  %v142 = vpack.c.b16 %v136, %v135
  %v143 = vpack.c.b16 %v138, %v137
  %v144 = vpack.c.b16 %v140, %v139
  %v181 = vunpack.c.l.b16 %v71
  %v182 = vunpack.c.h.b16 %v71
  %v183 = vunpack.c.l.b16 %v72
  %v184 = vunpack.c.h.b16 %v72
  %v185 = vunpack.c.l.b16 %v73
  %v186 = vunpack.c.h.b16 %v73
  %v187 = vunpack.c.l.b16 %v74
  %v188 = vunpack.c.h.b16 %v74
  %v189 = vunpack.c.l.b16 %v75
  %v190 = vunpack.c.h.b16 %v75
  %v191 = vunpack.c.l.b16 %v76
  %v192 = vunpack.c.h.b16 %v76
  %v193 = vunpack.c.l.b16 %v77
  %v194 = vunpack.c.h.b16 %v77
  %v195 = vunpack.c.l.b16 %v78
  %v196 = vunpack.c.h.b16 %v78
  %v197 = vunpack.c.l.b16 %v79
  %v198 = vunpack.c.h.b16 %v79
  %v199 = vunpack.c.l.b16 %v80
  %v200 = vunpack.c.h.b16 %v80
  %v201 = vunpack.c.l.b16 %v81
  %v202 = vunpack.c.h.b16 %v81
  %v203 = vunpack.c.l.b16 %v82
  %v204 = vunpack.c.h.b16 %v82
  %v205 = vunpack.c.l.b16 %v83
  %v206 = vunpack.c.h.b16 %v83
  %v207 = vunpack.c.l.b16 %v84
  %v208 = vunpack.c.h.b16 %v84
  %v209 = vunpack.c.l.b16 %v85
  %v210 = vunpack.c.h.b16 %v85
  %v211 = vunpack.c.l.b16 %v86
  %v212 = vunpack.c.h.b16 %v86
  %v213 = vunpack.c.l.b16 %v87
  %v214 = vunpack.c.h.b16 %v87
  %v215 = vunpack.c.l.b16 %v88
  %v216 = vunpack.c.h.b16 %v88
  %v217 = vunpack.c.l.b16 %v89
  %v218 = vunpack.c.h.b16 %v89
  %v219 = vunpack.c.l.b16 %v90
  %v220 = vunpack.c.h.b16 %v90
  %v221 = vunpack.c.l.b16 %v91
  %v222 = vunpack.c.h.b16 %v91
  %v223 = vunpack.c.l.b16 %v92
  %v224 = vunpack.c.h.b16 %v92
  %v225 = vunpack.c.l.b16 %v93
  %v226 = vunpack.c.h.b16 %v93
  %v227 = vunpack.c.l.b16 %v94
  %v228 = vunpack.c.h.b16 %v94
  %v229 = vunpack.c.l.b16 %v95
  %v230 = vunpack.c.h.b16 %v95
  %v231 = vunpack.c.l.b16 %v96
  %v232 = vunpack.c.h.b16 %v96
  %v233 = vunpack.c.l.b16 %v97
  %v234 = vunpack.c.h.b16 %v97
  %v235 = vunpack.c.l.b16 %v98
  %v236 = vunpack.c.h.b16 %v98
  %v237 = vunpack.c.l.b16 %v99
  %v238 = vunpack.c.h.b16 %v99
  %v239 = vunpack.c.l.b16 %v100
  %v240 = vunpack.c.h.b16 %v100
  %v241 = vunpack.c.l.b16 %v101
  %v242 = vunpack.c.h.b16 %v101
  %v243 = vunpack.c.l.b16 %v102
  %v244 = vunpack.c.h.b16 %v102
  %v245 = vpack.c.b16 %v185, %v181
  %v246 = vpack.c.b16 %v186, %v182
  %v247 = vpack.c.b16 %v187, %v183
  %v248 = vpack.c.b16 %v188, %v184
  %v249 = vpack.c.b16 %v193, %v189
  %v250 = vpack.c.b16 %v194, %v190
  %v251 = vpack.c.b16 %v195, %v191
  %v252 = vpack.c.b16 %v196, %v192
  %v253 = vpack.c.b16 %v201, %v197
  %v254 = vpack.c.b16 %v202, %v198
  %v255 = vpack.c.b16 %v203, %v199
  %v256 = vpack.c.b16 %v204, %v200
  %v257 = vpack.c.b16 %v209, %v205
  %v258 = vpack.c.b16 %v210, %v206
  %v259 = vpack.c.b16 %v211, %v207
  %v260 = vpack.c.b16 %v212, %v208
  %v261 = vpack.c.b16 %v217, %v213
  %v262 = vpack.c.b16 %v218, %v214
  %v263 = vpack.c.b16 %v219, %v215
  %v264 = vpack.c.b16 %v220, %v216
  %v265 = vpack.c.b16 %v225, %v221
  %v266 = vpack.c.b16 %v226, %v222
  %v267 = vpack.c.b16 %v227, %v223
  %v268 = vpack.c.b16 %v228, %v224
  %v269 = vpack.c.b16 %v233, %v229
  %v270 = vpack.c.b16 %v234, %v230
  %v271 = vpack.c.b16 %v235, %v231
  %v272 = vpack.c.b16 %v236, %v232
  %v273 = vpack.c.b16 %v241, %v237
  %v274 = vpack.c.b16 %v242, %v238
  %v275 = vpack.c.b16 %v243, %v239
  %v276 = vpack.c.b16 %v244, %v240
  %309 = vmatprep.subr.bf16.mxu0 %v246
  %310 = vmatpush1.bf16.msra.mxu0 %v245
  %311 = vmatprep.subr.bf16.mxu0 %v250
  %312 = vmatpush1.bf16.msra.mxu0 %v249
  %313 = vmatprep.subr.bf16.mxu0 %v254
  %314 = vmatpush1.bf16.msra.mxu0 %v253
  %315 = vmatprep.subr.bf16.mxu0 %v258
  %316 = vmatpush1.bf16.msra.mxu0 %v257
  %317 = vmatprep.subr.bf16.mxu0 %v262
  %318 = vmatpush1.bf16.msra.mxu0 %v261
  %319 = vmatprep.subr.bf16.mxu0 %v266
  %320 = vmatpush1.bf16.msra.mxu0 %v265
  %321 = vmatprep.subr.bf16.mxu0 %v270
  %322 = vmatpush1.bf16.msra.mxu0 %v269
  %323 = vmatprep.subr.bf16.mxu0 %v274
  %324 = vmatpush1.bf16.msra.mxu0 %v273
  %325 = vmatprep.subr.bf16.mxu0 0
  %326 = vmatpush1.bf16.msra.mxu0 0
  %327 = vmatprep.subr.bf16.mxu0 0
  %328 = vmatpush1.bf16.msra.mxu0 0
  %329 = vmatprep.subr.bf16.mxu0 0
  %330 = vmatpush1.bf16.msra.mxu0 0
  %331 = vmatprep.subr.bf16.mxu0 0
  %332 = vmatpush1.bf16.msra.mxu0 0
  %333 = vmatprep.subr.bf16.mxu0 0
  %334 = vmatpush1.bf16.msra.mxu0 0
  %335 = vmatprep.subr.bf16.mxu0 0
  %336 = vmatpush1.bf16.msra.mxu0 0
  %337 = vmatprep.subr.bf16.mxu0 0
  %338 = vmatpush1.bf16.msra.mxu0 0
  %339 = vmatprep.subr.bf16.mxu0 0
  %340 = vmatpush1.bf16.msra.mxu0 0
  %341 = vmatprep.mubr.bf16.mxu0 0
  %342 = vmatmul.mubr.bf16.gmra.mrb[0].mxu0 %v141
  %v343 = vpop.f32.mrb[0].mxu0
  %v344 = vadd.f32 %v108, %v343
  %v345 = vpop.f32.mrb[0].mxu0
  %v346 = vadd.f32 %v112, %v345
  %v347 = vpop.f32.mrb[0].mxu0
  %v348 = vadd.f32 %v108, %v347
  %v349 = vpop.f32.mrb[0].mxu0
  %v350 = vadd.f32 %v112, %v349
  %351 = vmatprep.mubr.bf16.mxu0 0
  %352 = vmatmul.mubr.bf16.gmra.mrb[0].mxu0 %v142
  %v353 = vpop.f32.mrb[0].mxu0
  %v354 = vadd.f32 %v108, %v353
  %v355 = vpop.f32.mrb[0].mxu0
  %v356 = vadd.f32 %v112, %v355
  %v357 = vpop.f32.mrb[0].mxu0
  %v358 = vadd.f32 %v108, %v357
  %v359 = vpop.f32.mrb[0].mxu0
  %v360 = vadd.f32 %v112, %v359
  %361 = vmatprep.mubr.bf16.mxu0 0
  %362 = vmatmul.mubr.bf16.gmra.mrb[0].mxu0 %v143
  %v363 = vpop.f32.mrb[0].mxu0
  %v364 = vadd.f32 %v108, %v363
  %v365 = vpop.f32.mrb[0].mxu0
  %v366 = vadd.f32 %v112, %v365
  %v367 = vpop.f32.mrb[0].mxu0
  %v368 = vadd.f32 %v108, %v367
  %v369 = vpop.f32.mrb[0].mxu0
  %v370 = vadd.f32 %v112, %v369
  %371 = vmatprep.mubr.bf16.mxu0 0
  %372 = vmatmul.mubr.bf16.gmra.mrb[0].mxu0 %v144
  %v373 = vpop.f32.mrb[0].mxu0
  %v374 = vadd.f32 %v108, %v373
  %v375 = vpop.f32.mrb[0].mxu0
  %v376 = vadd.f32 %v112, %v375
  %v377 = vpop.f32.mrb[0].mxu0
  %v378 = vadd.f32 %v108, %v377
  %v379 = vpop.f32.mrb[0].mxu0
  %v380 = vadd.f32 %v112, %v379
  %381 = vdwg.mxu0
  %382 = vmatprep.subr.bf16.mxu0 %v248
  %383 = vmatpush1.bf16.msra.mxu0 %v247
  %384 = vmatprep.subr.bf16.mxu0 %v252
  %385 = vmatpush1.bf16.msra.mxu0 %v251
  %386 = vmatprep.subr.bf16.mxu0 %v256
  %387 = vmatpush1.bf16.msra.mxu0 %v255
  %388 = vmatprep.subr.bf16.mxu0 %v260
  %389 = vmatpush1.bf16.msra.mxu0 %v259
  %390 = vmatprep.subr.bf16.mxu0 %v264
  %391 = vmatpush1.bf16.msra.mxu0 %v263
  %392 = vmatprep.subr.bf16.mxu0 %v268
  %393 = vmatpush1.bf16.msra.mxu0 %v267
  %394 = vmatprep.subr.bf16.mxu0 %v272
  %395 = vmatpush1.bf16.msra.mxu0 %v271
  %396 = vmatprep.subr.bf16.mxu0 %v276
  %397 = vmatpush1.bf16.msra.mxu0 %v275
  %398 = vmatprep.subr.bf16.mxu0 0
  %399 = vmatpush1.bf16.msra.mxu0 0
  %400 = vmatprep.subr.bf16.mxu0 0
  %401 = vmatpush1.bf16.msra.mxu0 0
  %402 = vmatprep.subr.bf16.mxu0 0
  %403 = vmatpush1.bf16.msra.mxu0 0
  %404 = vmatprep.subr.bf16.mxu0 0
  %405 = vmatpush1.bf16.msra.mxu0 0
  %406 = vmatprep.subr.bf16.mxu0 0
  %407 = vmatpush1.bf16.msra.mxu0 0
  %408 = vmatprep.subr.bf16.mxu0 0
  %409 = vmatpush1.bf16.msra.mxu0 0
  %410 = vmatprep.subr.bf16.mxu0 0
  %411 = vmatpush1.bf16.msra.mxu0 0
  %412 = vmatprep.subr.bf16.mxu0 0
  %413 = vmatpush1.bf16.msra.mxu0 0
  %414 = vmatprep.mubr.bf16.mxu0 0
  %415 = vmatmul.mubr.bf16.gmra.mrb[0].mxu0 %v141
  %v416 = vpop.f32.mrb[0].mxu0
  %v417 = vadd.f32 %v116, %v416
  %v418 = vpop.f32.mrb[0].mxu0
  %v419 = vadd.f32 %v120, %v418
  %v420 = vpop.f32.mrb[0].mxu0
  %v421 = vadd.f32 %v116, %v420
  %v422 = vpop.f32.mrb[0].mxu0
  %v423 = vadd.f32 %v120, %v422
  %424 = vmatprep.mubr.bf16.mxu0 0
  %425 = vmatmul.mubr.bf16.gmra.mrb[0].mxu0 %v142
  %v426 = vpop.f32.mrb[0].mxu0
  %v427 = vadd.f32 %v116, %v426
  %v428 = vpop.f32.mrb[0].mxu0
  %v429 = vadd.f32 %v120, %v428
  %v430 = vpop.f32.mrb[0].mxu0
  %v431 = vadd.f32 %v116, %v430
  %v432 = vpop.f32.mrb[0].mxu0
  %v433 = vadd.f32 %v120, %v432
  %434 = vmatprep.mubr.bf16.mxu0 0
  %435 = vmatmul.mubr.bf16.gmra.mrb[0].mxu0 %v143
  %v436 = vpop.f32.mrb[0].mxu0
  %v437 = vadd.f32 %v116, %v436
  %v438 = vpop.f32.mrb[0].mxu0
  %v439 = vadd.f32 %v120, %v438
  %v440 = vpop.f32.mrb[0].mxu0
  %v441 = vadd.f32 %v116, %v440
  %v442 = vpop.f32.mrb[0].mxu0
  %v443 = vadd.f32 %v120, %v442
  %444 = vmatprep.mubr.bf16.mxu0 0
  %445 = vmatmul.mubr.bf16.gmra.mrb[0].mxu0 %v144
  %v446 = vpop.f32.mrb[0].mxu0
  %v447 = vadd.f32 %v116, %v446
  %v448 = vpop.f32.mrb[0].mxu0
  %v449 = vadd.f32 %v120, %v448
  %v450 = vpop.f32.mrb[0].mxu0
  %v451 = vadd.f32 %v116, %v450
  %v452 = vpop.f32.mrb[0].mxu0
  %v453 = vadd.f32 %v120, %v452
  %454 = vdwg.mxu0
  %455 = vst [vmem:[#allocation2] sm:$0xff] %v344
  %456 = vst [vmem:[#allocation2 + $0x8] sm:$0xff] %v346
  %457 = vst [vmem:[#allocation2 + $0x10] sm:$0xff] %v417
  %458 = vst [vmem:[#allocation2 + $0x18] sm:$0xff] %v419
  %459 = vst [vmem:[#allocation2 + $0x20] sm:$0xff] %v348
  %460 = vst [vmem:[#allocation2 + $0x28] sm:$0xff] %v350
  %461 = vst [vmem:[#allocation2 + $0x30] sm:$0xff] %v421
  %462 = vst [vmem:[#allocation2 + $0x38] sm:$0xff] %v423
  %463 = vst [vmem:[#allocation2 + $0x40] sm:$0xff] %v354
  %464 = vst [vmem:[#allocation2 + $0x48] sm:$0xff] %v356
  %465 = vst [vmem:[#allocation2 + $0x50] sm:$0xff] %v427
  %466 = vst [vmem:[#allocation2 + $0x58] sm:$0xff] %v429
  %467 = vst [vmem:[#allocation2 + $0x60] sm:$0xff] %v358
  %468 = vst [vmem:[#allocation2 + $0x68] sm:$0xff] %v360
  %469 = vst [vmem:[#allocation2 + $0x70] sm:$0xff] %v431
  %470 = vst [vmem:[#allocation2 + $0x78] sm:$0xff] %v433
  %471 = vst [vmem:[#allocation2 + $0x80] sm:$0xff] %v364
  %472 = vst [vmem:[#allocation2 + $0x88] sm:$0xff] %v366
  %473 = vst [vmem:[#allocation2 + $0x90] sm:$0xff] %v437
  %474 = vst [vmem:[#allocation2 + $0x98] sm:$0xff] %v439
  %475 = vst [vmem:[#allocation2 + $0xa0] sm:$0xff] %v368
  %476 = vst [vmem:[#allocation2 + $0xa8] sm:$0xff] %v370
  %477 = vst [vmem:[#allocation2 + $0xb0] sm:$0xff] %v441
  %478 = vst [vmem:[#allocation2 + $0xb8] sm:$0xff] %v443
  %479 = vst [vmem:[#allocation2 + $0xc0] sm:$0xff] %v374
  %480 = vst [vmem:[#allocation2 + $0xc8] sm:$0xff] %v376
  %481 = vst [vmem:[#allocation2 + $0xd0] sm:$0xff] %v447
  %482 = vst [vmem:[#allocation2 + $0xd8] sm:$0xff] %v449
  %483 = vst [vmem:[#allocation2 + $0xe0] sm:$0xff] %v378
  %484 = vst [vmem:[#allocation2 + $0xe8] sm:$0xff] %v380
  %485 = vst [vmem:[#allocation2 + $0xf0] sm:$0xff] %v451
  %486 = vst [vmem:[#allocation2 + $0xf8] sm:$0xff] %v453
  %s487 = smul.u32 0, 8
  %v488 = vld [vmem:[%s6] sm:$0xff]
  %v489 = vld [vmem:[%s7] sm:$0xff]
  %s490 = smul.u32 0, 4
  %s491 = smul.addr %s490, 8
  %s492 = scalar_lea.vmem [#allocation2], %s491
  %v493 = vld [vmem:[%s492] sm:$0xff]
  %v494 = vld [vmem:[%s492 + $0x8] sm:$0xff]
  %v495 = vld [vmem:[%s492 + $0x10] sm:$0xff]
  %v496 = vld [vmem:[%s492 + $0x18] sm:$0xff]
  %v497 = vpack.c.bf16 %v488, %v488
  %v530 = vunpack.c.l.b16 %v31
  %v531 = vunpack.c.h.b16 %v31
  %v532 = vunpack.c.l.b16 %v32
  %v533 = vunpack.c.h.b16 %v32
  %v534 = vunpack.c.l.b16 %v33
  %v535 = vunpack.c.h.b16 %v33
  %v536 = vunpack.c.l.b16 %v34
  %v537 = vunpack.c.h.b16 %v34
  %v538 = vunpack.c.l.b16 %v35
  %v539 = vunpack.c.h.b16 %v35
  %v540 = vunpack.c.l.b16 %v36
  %v541 = vunpack.c.h.b16 %v36
  %v542 = vunpack.c.l.b16 %v37
  %v543 = vunpack.c.h.b16 %v37
  %v544 = vunpack.c.l.b16 %v38
  %v545 = vunpack.c.h.b16 %v38
  %v546 = vunpack.c.l.b16 %v39
  %v547 = vunpack.c.h.b16 %v39
  %v548 = vunpack.c.l.b16 %v40
  %v549 = vunpack.c.h.b16 %v40
  %v550 = vunpack.c.l.b16 %v41
  %v551 = vunpack.c.h.b16 %v41
  %v552 = vunpack.c.l.b16 %v42
  %v553 = vunpack.c.h.b16 %v42
  %v554 = vunpack.c.l.b16 %v43
  %v555 = vunpack.c.h.b16 %v43
  %v556 = vunpack.c.l.b16 %v44
  %v557 = vunpack.c.h.b16 %v44
  %v558 = vunpack.c.l.b16 %v45
  %v559 = vunpack.c.h.b16 %v45
  %v560 = vunpack.c.l.b16 %v46
  %v561 = vunpack.c.h.b16 %v46
  %v562 = vunpack.c.l.b16 %v47
  %v563 = vunpack.c.h.b16 %v47
  %v564 = vunpack.c.l.b16 %v48
  %v565 = vunpack.c.h.b16 %v48
  %v566 = vunpack.c.l.b16 %v49
  %v567 = vunpack.c.h.b16 %v49
  %v568 = vunpack.c.l.b16 %v50
  %v569 = vunpack.c.h.b16 %v50
  %v570 = vunpack.c.l.b16 %v51
  %v571 = vunpack.c.h.b16 %v51
  %v572 = vunpack.c.l.b16 %v52
  %v573 = vunpack.c.h.b16 %v52
  %v574 = vunpack.c.l.b16 %v53
  %v575 = vunpack.c.h.b16 %v53
  %v576 = vunpack.c.l.b16 %v54
  %v577 = vunpack.c.h.b16 %v54
  %v578 = vunpack.c.l.b16 %v55
  %v579 = vunpack.c.h.b16 %v55
  %v580 = vunpack.c.l.b16 %v56
  %v581 = vunpack.c.h.b16 %v56
  %v582 = vunpack.c.l.b16 %v57
  %v583 = vunpack.c.h.b16 %v57
  %v584 = vunpack.c.l.b16 %v58
  %v585 = vunpack.c.h.b16 %v58
  %v586 = vunpack.c.l.b16 %v59
  %v587 = vunpack.c.h.b16 %v59
  %v588 = vunpack.c.l.b16 %v60
  %v589 = vunpack.c.h.b16 %v60
  %v590 = vunpack.c.l.b16 %v61
  %v591 = vunpack.c.h.b16 %v61
  %v592 = vunpack.c.l.b16 %v62
  %v593 = vunpack.c.h.b16 %v62
  %v594 = vpack.c.b16 %v534, %v530
  %v595 = vpack.c.b16 %v535, %v531
  %v596 = vpack.c.b16 %v536, %v532
  %v597 = vpack.c.b16 %v537, %v533
  %v598 = vpack.c.b16 %v542, %v538
  %v599 = vpack.c.b16 %v543, %v539
  %v600 = vpack.c.b16 %v544, %v540
  %v601 = vpack.c.b16 %v545, %v541
  %v602 = vpack.c.b16 %v550, %v546
  %v603 = vpack.c.b16 %v551, %v547
  %v604 = vpack.c.b16 %v552, %v548
  %v605 = vpack.c.b16 %v553, %v549
  %v606 = vpack.c.b16 %v558, %v554
  %v607 = vpack.c.b16 %v559, %v555
  %v608 = vpack.c.b16 %v560, %v556
  %v609 = vpack.c.b16 %v561, %v557
  %v610 = vpack.c.b16 %v566, %v562
  %v611 = vpack.c.b16 %v567, %v563
  %v612 = vpack.c.b16 %v568, %v564
  %v613 = vpack.c.b16 %v569, %v565
  %v614 = vpack.c.b16 %v574, %v570
  %v615 = vpack.c.b16 %v575, %v571
  %v616 = vpack.c.b16 %v576, %v572
  %v617 = vpack.c.b16 %v577, %v573
  %v618 = vpack.c.b16 %v582, %v578
  %v619 = vpack.c.b16 %v583, %v579
  %v620 = vpack.c.b16 %v584, %v580
  %v621 = vpack.c.b16 %v585, %v581
  %v622 = vpack.c.b16 %v590, %v586
  %v623 = vpack.c.b16 %v591, %v587
  %v624 = vpack.c.b16 %v592, %v588
  %v625 = vpack.c.b16 %v593, %v589
  %658 = vmatprep.subr.bf16.mxu0 %v595
  %659 = vmatpush1.bf16.msra.mxu0 %v594
  %660 = vmatprep.subr.bf16.mxu0 %v599
  %661 = vmatpush1.bf16.msra.mxu0 %v598
  %662 = vmatprep.subr.bf16.mxu0 %v603
  %663 = vmatpush1.bf16.msra.mxu0 %v602
  %664 = vmatprep.subr.bf16.mxu0 %v607
  %665 = vmatpush1.bf16.msra.mxu0 %v606
  %666 = vmatprep.subr.bf16.mxu0 %v611
  %667 = vmatpush1.bf16.msra.mxu0 %v610
  %668 = vmatprep.subr.bf16.mxu0 %v615
  %669 = vmatpush1.bf16.msra.mxu0 %v614
  %670 = vmatprep.subr.bf16.mxu0 %v619
  %671 = vmatpush1.bf16.msra.mxu0 %v618
  %672 = vmatprep.subr.bf16.mxu0 %v623
  %673 = vmatpush1.bf16.msra.mxu0 %v622
  %674 = vmatprep.subr.bf16.mxu0 0
  %675 = vmatpush1.bf16.msra.mxu0 0
  %676 = vmatprep.subr.bf16.mxu0 0
  %677 = vmatpush1.bf16.msra.mxu0 0
  %678 = vmatprep.subr.bf16.mxu0 0
  %679 = vmatpush1.bf16.msra.mxu0 0
  %680 = vmatprep.subr.bf16.mxu0 0
  %681 = vmatpush1.bf16.msra.mxu0 0
  %682 = vmatprep.subr.bf16.mxu0 0
  %683 = vmatpush1.bf16.msra.mxu0 0
  %684 = vmatprep.subr.bf16.mxu0 0
  %685 = vmatpush1.bf16.msra.mxu0 0
  %686 = vmatprep.subr.bf16.mxu0 0
  %687 = vmatpush1.bf16.msra.mxu0 0
  %688 = vmatprep.subr.bf16.mxu0 0
  %689 = vmatpush1.bf16.msra.mxu0 0
  %690 = vmatprep.mubr.bf16.mxu0 0
  %691 = vmatmul.mubr.bf16.gmra.mrb[0].mxu0 %v497
  %v692 = vpop.f32.mrb[0].mxu0
  %v693 = vadd.f32 0.0, %v692
  %v694 = vpop.f32.mrb[0].mxu0
  %v695 = vadd.f32 0.0, %v694
  %v696 = vpop.f32.mrb[0].mxu0
  %v697 = vpop.f32.mrb[0].mxu0
  %698 = vdwg.mxu0
  %699 = vmatprep.subr.bf16.mxu0 %v597
  %700 = vmatpush1.bf16.msra.mxu0 %v596
  %701 = vmatprep.subr.bf16.mxu0 %v601
  %702 = vmatpush1.bf16.msra.mxu0 %v600
  %703 = vmatprep.subr.bf16.mxu0 %v605
  %704 = vmatpush1.bf16.msra.mxu0 %v604
  %705 = vmatprep.subr.bf16.mxu0 %v609
  %706 = vmatpush1.bf16.msra.mxu0 %v608
  %707 = vmatprep.subr.bf16.mxu0 %v613
  %708 = vmatpush1.bf16.msra.mxu0 %v612
  %709 = vmatprep.subr.bf16.mxu0 %v617
  %710 = vmatpush1.bf16.msra.mxu0 %v616
  %711 = vmatprep.subr.bf16.mxu0 %v621
  %712 = vmatpush1.bf16.msra.mxu0 %v620
  %713 = vmatprep.subr.bf16.mxu0 %v625
  %714 = vmatpush1.bf16.msra.mxu0 %v624
  %715 = vmatprep.subr.bf16.mxu0 0
  %716 = vmatpush1.bf16.msra.mxu0 0
  %717 = vmatprep.subr.bf16.mxu0 0
  %718 = vmatpush1.bf16.msra.mxu0 0
  %719 = vmatprep.subr.bf16.mxu0 0
  %720 = vmatpush1.bf16.msra.mxu0 0
  %721 = vmatprep.subr.bf16.mxu0 0
  %722 = vmatpush1.bf16.msra.mxu0 0
  %723 = vmatprep.subr.bf16.mxu0 0
  %724 = vmatpush1.bf16.msra.mxu0 0
  %725 = vmatprep.subr.bf16.mxu0 0
  %726 = vmatpush1.bf16.msra.mxu0 0
  %727 = vmatprep.subr.bf16.mxu0 0
  %728 = vmatpush1.bf16.msra.mxu0 0
  %729 = vmatprep.subr.bf16.mxu0 0
  %730 = vmatpush1.bf16.msra.mxu0 0
  %731 = vmatprep.mubr.bf16.mxu0 0
  %732 = vmatmul.mubr.bf16.gmra.mrb[0].mxu0 %v497
  %v733 = vpop.f32.mrb[0].mxu0
  %v734 = vadd.f32 0.0, %v733
  %v735 = vpop.f32.mrb[0].mxu0
  %v736 = vadd.f32 0.0, %v735
  %v737 = vpop.f32.mrb[0].mxu0
  %v738 = vpop.f32.mrb[0].mxu0
  %739 = vdwg.mxu0
  %v740 = vadd.f32 %v493, %v693
  %v741 = vadd.f32 %v494, %v695
  %v742 = vadd.f32 %v495, %v734
  %v743 = vadd.f32 %v496, %v736
  %v744 = vxor.u32 %v740, 2147483648
  %v745 = vxor.u32 %v741, 2147483648
  %v746 = vxor.u32 %v742, 2147483648
  %v747 = vmul.f32 %v744, 1.442695
  %v748 = vpow.pop %v747
  %v749 = vmul.f32 %v745, 1.442695
  %v750 = vpow.pop %v749
  %v751 = vmul.f32 %v746, 1.442695
  %v752 = vpow.pop %v751
  %v753 = vadd.f32 %v748, 1.0
  %v754 = vadd.f32 %v750, 1.0
  %v755 = vadd.f32 %v752, 1.0
  %v756 = vrcp.pop %v753
  %v757 = vmul.f32 1.0, %v756
  %v758 = vrcp.pop %v754
  %v759 = vmul.f32 1.0, %v758
  %v760 = vrcp.pop %v755
  %v761 = vmul.f32 1.0, %v760
  %v762 = vtanh.pop %v743
  %v763 = vmul.f32 %v759, %v489
  %v764 = vmul.f32 %v757, %v762
  %v765 = vadd.f32 %v763, %v764
  %v766 = vtanh.pop %v765
  %v767 = vmul.f32 %v761, %v766
  %v768 = vstv %s487
  %vm769 = vcmp.lt.s32.totalorder %v768, %v30
  %v770 = vsel %vm769, 1, 0
  %771 = vset.pattern.permute.xlu0 0
  %772 = vperm.xlu0 %771, %v770
  %v773 = vpop.permute.xlu0 %772
  %vm774 = vcmp.eq.s32.totalorder %v773, 1
  %v775 = vsel %vm774, %v765, %v489
  %776 = vst [vmem:[%s7] sm:$0xff] %v775
  %v777 = vsel %vm774, %v767, %v488
  %778 = vst [vmem:[%s6] sm:$0xff] %v777
  %v779 = vsel %vm774, %v767, 0.0
  %780 = vst [vmem:[%s5] sm:$0xff] %v779
  %s781 = sadd.s32 %s487, 1
  %v782 = vld [vmem:[%s6] sm:$0xff]
  %v783 = vld [vmem:[%s7] sm:$0xff]
  %s784 = smul.u32 1, 4
  %s785 = smul.addr %s784, 8
  %s786 = scalar_lea.vmem [#allocation2], %s785
  %v787 = vld [vmem:[%s786] sm:$0xff]
  %v788 = vld [vmem:[%s786 + $0x8] sm:$0xff]
  %v789 = vld [vmem:[%s786 + $0x10] sm:$0xff]
  %v790 = vld [vmem:[%s786 + $0x18] sm:$0xff]
  %v791 = vpack.c.bf16 %v782, %v782
  %792 = vmatprep.subr.bf16.mxu0 %v595
  %793 = vmatpush1.bf16.msra.mxu0 %v594
  %794 = vmatprep.subr.bf16.mxu0 %v599
  %795 = vmatpush1.bf16.msra.mxu0 %v598
  %796 = vmatprep.subr.bf16.mxu0 %v603
  %797 = vmatpush1.bf16.msra.mxu0 %v602
  %798 = vmatprep.subr.bf16.mxu0 %v607
  %799 = vmatpush1.bf16.msra.mxu0 %v606
  %800 = vmatprep.subr.bf16.mxu0 %v611
  %801 = vmatpush1.bf16.msra.mxu0 %v610
  %802 = vmatprep.subr.bf16.mxu0 %v615
  %803 = vmatpush1.bf16.msra.mxu0 %v614
  %804 = vmatprep.subr.bf16.mxu0 %v619
  %805 = vmatpush1.bf16.msra.mxu0 %v618
  %806 = vmatprep.subr.bf16.mxu0 %v623
  %807 = vmatpush1.bf16.msra.mxu0 %v622
  %808 = vmatprep.subr.bf16.mxu0 0
  %809 = vmatpush1.bf16.msra.mxu0 0
  %810 = vmatprep.subr.bf16.mxu0 0
  %811 = vmatpush1.bf16.msra.mxu0 0
  %812 = vmatprep.subr.bf16.mxu0 0
  %813 = vmatpush1.bf16.msra.mxu0 0
  %814 = vmatprep.subr.bf16.mxu0 0
  %815 = vmatpush1.bf16.msra.mxu0 0
  %816 = vmatprep.subr.bf16.mxu0 0
  %817 = vmatpush1.bf16.msra.mxu0 0
  %818 = vmatprep.subr.bf16.mxu0 0
  %819 = vmatpush1.bf16.msra.mxu0 0
  %820 = vmatprep.subr.bf16.mxu0 0
  %821 = vmatpush1.bf16.msra.mxu0 0
  %822 = vmatprep.subr.bf16.mxu0 0
  %823 = vmatpush1.bf16.msra.mxu0 0
  %824 = vmatprep.mubr.bf16.mxu0 0
  %825 = vmatmul.mubr.bf16.gmra.mrb[0].mxu0 %v791
  %v826 = vpop.f32.mrb[0].mxu0
  %v827 = vadd.f32 0.0, %v826
  %v828 = vpop.f32.mrb[0].mxu0
  %v829 = vadd.f32 0.0, %v828
  %v830 = vpop.f32.mrb[0].mxu0
  %v831 = vpop.f32.mrb[0].mxu0
  %832 = vdwg.mxu0
  %833 = vmatprep.subr.bf16.mxu0 %v597
  %834 = vmatpush1.bf16.msra.mxu0 %v596
  %835 = vmatprep.subr.bf16.mxu0 %v601
  %836 = vmatpush1.bf16.msra.mxu0 %v600
  %837 = vmatprep.subr.bf16.mxu0 %v605
  %838 = vmatpush1.bf16.msra.mxu0 %v604
  %839 = vmatprep.subr.bf16.mxu0 %v609
  %840 = vmatpush1.bf16.msra.mxu0 %v608
  %841 = vmatprep.subr.bf16.mxu0 %v613
  %842 = vmatpush1.bf16.msra.mxu0 %v612
  %843 = vmatprep.subr.bf16.mxu0 %v617
  %844 = vmatpush1.bf16.msra.mxu0 %v616
  %845 = vmatprep.subr.bf16.mxu0 %v621
  %846 = vmatpush1.bf16.msra.mxu0 %v620
  %847 = vmatprep.subr.bf16.mxu0 %v625
  %848 = vmatpush1.bf16.msra.mxu0 %v624
  %849 = vmatprep.subr.bf16.mxu0 0
  %850 = vmatpush1.bf16.msra.mxu0 0
  %851 = vmatprep.subr.bf16.mxu0 0
  %852 = vmatpush1.bf16.msra.mxu0 0
  %853 = vmatprep.subr.bf16.mxu0 0
  %854 = vmatpush1.bf16.msra.mxu0 0
  %855 = vmatprep.subr.bf16.mxu0 0
  %856 = vmatpush1.bf16.msra.mxu0 0
  %857 = vmatprep.subr.bf16.mxu0 0
  %858 = vmatpush1.bf16.msra.mxu0 0
  %859 = vmatprep.subr.bf16.mxu0 0
  %860 = vmatpush1.bf16.msra.mxu0 0
  %861 = vmatprep.subr.bf16.mxu0 0
  %862 = vmatpush1.bf16.msra.mxu0 0
  %863 = vmatprep.subr.bf16.mxu0 0
  %864 = vmatpush1.bf16.msra.mxu0 0
  %865 = vmatprep.mubr.bf16.mxu0 0
  %866 = vmatmul.mubr.bf16.gmra.mrb[0].mxu0 %v791
  %v867 = vpop.f32.mrb[0].mxu0
  %v868 = vadd.f32 0.0, %v867
  %v869 = vpop.f32.mrb[0].mxu0
  %v870 = vadd.f32 0.0, %v869
  %v871 = vpop.f32.mrb[0].mxu0
  %v872 = vpop.f32.mrb[0].mxu0
  %873 = vdwg.mxu0
  %v874 = vadd.f32 %v787, %v827
  %v875 = vadd.f32 %v788, %v829
  %v876 = vadd.f32 %v789, %v868
  %v877 = vadd.f32 %v790, %v870
  %v878 = vxor.u32 %v874, 2147483648
  %v879 = vxor.u32 %v875, 2147483648
  %v880 = vxor.u32 %v876, 2147483648
  %v881 = vmul.f32 %v878, 1.442695
  %v882 = vpow.pop %v881
  %v883 = vmul.f32 %v879, 1.442695
  %v884 = vpow.pop %v883
  %v885 = vmul.f32 %v880, 1.442695
  %v886 = vpow.pop %v885
  %v887 = vadd.f32 %v882, 1.0
  %v888 = vadd.f32 %v884, 1.0
  %v889 = vadd.f32 %v886, 1.0
  %v890 = vrcp.pop %v887
  %v891 = vmul.f32 1.0, %v890
  %v892 = vrcp.pop %v888
  %v893 = vmul.f32 1.0, %v892
  %v894 = vrcp.pop %v889
  %v895 = vmul.f32 1.0, %v894
  %v896 = vtanh.pop %v877
  %v897 = vmul.f32 %v893, %v783
  %v898 = vmul.f32 %v891, %v896
  %v899 = vadd.f32 %v897, %v898
  %v900 = vtanh.pop %v899
  %v901 = vmul.f32 %v895, %v900
  %v902 = vstv %s781
  %vm903 = vcmp.lt.s32.totalorder %v902, %v30
  %v904 = vsel %vm903, 1, 0
  %905 = vset.pattern.permute.xlu0 0
  %906 = vperm.xlu0 %905, %v904
  %v907 = vpop.permute.xlu0 %906
  %vm908 = vcmp.eq.s32.totalorder %v907, 1
  %v909 = vsel %vm908, %v899, %v783
  %910 = vst [vmem:[%s7] sm:$0xff] %v909
  %v911 = vsel %vm908, %v901, %v782
  %912 = vst [vmem:[%s6] sm:$0xff] %v911
  %v913 = vsel %vm908, %v901, 0.0
  %s914 = scalar_lea.vmem %s5, 8
  %915 = vst [vmem:[%s914] sm:$0xff] %v913
  %s916 = sadd.s32 %s487, 2
  %v917 = vld [vmem:[%s6] sm:$0xff]
  %v918 = vld [vmem:[%s7] sm:$0xff]
  %s919 = smul.u32 2, 4
  %s920 = smul.addr %s919, 8
  %s921 = scalar_lea.vmem [#allocation2], %s920
  %v922 = vld [vmem:[%s921] sm:$0xff]
  %v923 = vld [vmem:[%s921 + $0x8] sm:$0xff]
  %v924 = vld [vmem:[%s921 + $0x10] sm:$0xff]
  %v925 = vld [vmem:[%s921 + $0x18] sm:$0xff]
  %v926 = vpack.c.bf16 %v917, %v917
  %927 = vmatprep.subr.bf16.mxu0 %v595
  %928 = vmatpush1.bf16.msra.mxu0 %v594
  %929 = vmatprep.subr.bf16.mxu0 %v599
  %930 = vmatpush1.bf16.msra.mxu0 %v598
  %931 = vmatprep.subr.bf16.mxu0 %v603
  %932 = vmatpush1.bf16.msra.mxu0 %v602
  %933 = vmatprep.subr.bf16.mxu0 %v607
  %934 = vmatpush1.bf16.msra.mxu0 %v606
  %935 = vmatprep.subr.bf16.mxu0 %v611
  %936 = vmatpush1.bf16.msra.mxu0 %v610
  %937 = vmatprep.subr.bf16.mxu0 %v615
  %938 = vmatpush1.bf16.msra.mxu0 %v614
  %939 = vmatprep.subr.bf16.mxu0 %v619
  %940 = vmatpush1.bf16.msra.mxu0 %v618
  %941 = vmatprep.subr.bf16.mxu0 %v623
  %942 = vmatpush1.bf16.msra.mxu0 %v622
  %943 = vmatprep.subr.bf16.mxu0 0
  %944 = vmatpush1.bf16.msra.mxu0 0
  %945 = vmatprep.subr.bf16.mxu0 0
  %946 = vmatpush1.bf16.msra.mxu0 0
  %947 = vmatprep.subr.bf16.mxu0 0
  %948 = vmatpush1.bf16.msra.mxu0 0
  %949 = vmatprep.subr.bf16.mxu0 0
  %950 = vmatpush1.bf16.msra.mxu0 0
  %951 = vmatprep.subr.bf16.mxu0 0
  %952 = vmatpush1.bf16.msra.mxu0 0
  %953 = vmatprep.subr.bf16.mxu0 0
  %954 = vmatpush1.bf16.msra.mxu0 0
  %955 = vmatprep.subr.bf16.mxu0 0
  %956 = vmatpush1.bf16.msra.mxu0 0
  %957 = vmatprep.subr.bf16.mxu0 0
  %958 = vmatpush1.bf16.msra.mxu0 0
  %959 = vmatprep.mubr.bf16.mxu0 0
  %960 = vmatmul.mubr.bf16.gmra.mrb[0].mxu0 %v926
  %v961 = vpop.f32.mrb[0].mxu0
  %v962 = vadd.f32 0.0, %v961
  %v963 = vpop.f32.mrb[0].mxu0
  %v964 = vadd.f32 0.0, %v963
  %v965 = vpop.f32.mrb[0].mxu0
  %v966 = vpop.f32.mrb[0].mxu0
  %967 = vdwg.mxu0
  %968 = vmatprep.subr.bf16.mxu0 %v597
  %969 = vmatpush1.bf16.msra.mxu0 %v596
  %970 = vmatprep.subr.bf16.mxu0 %v601
  %971 = vmatpush1.bf16.msra.mxu0 %v600
  %972 = vmatprep.subr.bf16.mxu0 %v605
  %973 = vmatpush1.bf16.msra.mxu0 %v604
  %974 = vmatprep.subr.bf16.mxu0 %v609
  %975 = vmatpush1.bf16.msra.mxu0 %v608
  %976 = vmatprep.subr.bf16.mxu0 %v613
  %977 = vmatpush1.bf16.msra.mxu0 %v612
  %978 = vmatprep.subr.bf16.mxu0 %v617
  %979 = vmatpush1.bf16.msra.mxu0 %v616
  %980 = vmatprep.subr.bf16.mxu0 %v621
  %981 = vmatpush1.bf16.msra.mxu0 %v620
  %982 = vmatprep.subr.bf16.mxu0 %v625
  %983 = vmatpush1.bf16.msra.mxu0 %v624
  %984 = vmatprep.subr.bf16.mxu0 0
  %985 = vmatpush1.bf16.msra.mxu0 0
  %986 = vmatprep.subr.bf16.mxu0 0
  %987 = vmatpush1.bf16.msra.mxu0 0
  %988 = vmatprep.subr.bf16.mxu0 0
  %989 = vmatpush1.bf16.msra.mxu0 0
  %990 = vmatprep.subr.bf16.mxu0 0
  %991 = vmatpush1.bf16.msra.mxu0 0
  %992 = vmatprep.subr.bf16.mxu0 0
  %993 = vmatpush1.bf16.msra.mxu0 0
  %994 = vmatprep.subr.bf16.mxu0 0
  %995 = vmatpush1.bf16.msra.mxu0 0
  %996 = vmatprep.subr.bf16.mxu0 0
  %997 = vmatpush1.bf16.msra.mxu0 0
  %998 = vmatprep.subr.bf16.mxu0 0
  %999 = vmatpush1.bf16.msra.mxu0 0
  %1000 = vmatprep.mubr.bf16.mxu0 0
  %1001 = vmatmul.mubr.bf16.gmra.mrb[0].mxu0 %v926
  %v1002 = vpop.f32.mrb[0].mxu0
  %v1003 = vadd.f32 0.0, %v1002
  %v1004 = vpop.f32.mrb[0].mxu0
  %v1005 = vadd.f32 0.0, %v1004
  %v1006 = vpop.f32.mrb[0].mxu0
  %v1007 = vpop.f32.mrb[0].mxu0
  %1008 = vdwg.mxu0
  %v1009 = vadd.f32 %v922, %v962
  %v1010 = vadd.f32 %v923, %v964
  %v1011 = vadd.f32 %v924, %v1003
  %v1012 = vadd.f32 %v925, %v1005
  %v1013 = vxor.u32 %v1009, 2147483648
  %v1014 = vxor.u32 %v1010, 2147483648
  %v1015 = vxor.u32 %v1011, 2147483648
  %v1016 = vmul.f32 %v1013, 1.442695
  %v1017 = vpow.pop %v1016
  %v1018 = vmul.f32 %v1014, 1.442695
  %v1019 = vpow.pop %v1018
  %v1020 = vmul.f32 %v1015, 1.442695
  %v1021 = vpow.pop %v1020
  %v1022 = vadd.f32 %v1017, 1.0
  %v1023 = vadd.f32 %v1019, 1.0
  %v1024 = vadd.f32 %v1021, 1.0
  %v1025 = vrcp.pop %v1022
  %v1026 = vmul.f32 1.0, %v1025
  %v1027 = vrcp.pop %v1023
  %v1028 = vmul.f32 1.0, %v1027
  %v1029 = vrcp.pop %v1024
  %v1030 = vmul.f32 1.0, %v1029
  %v1031 = vtanh.pop %v1012
  %v1032 = vmul.f32 %v1028, %v918
  %v1033 = vmul.f32 %v1026, %v1031
  %v1034 = vadd.f32 %v1032, %v1033
  %v1035 = vtanh.pop %v1034
  %v1036 = vmul.f32 %v1030, %v1035
  %v1037 = vstv %s916
  %vm1038 = vcmp.lt.s32.totalorder %v1037, %v30
  %v1039 = vsel %vm1038, 1, 0
  %1040 = vset.pattern.permute.xlu0 0
  %1041 = vperm.xlu0 %1040, %v1039
  %v1042 = vpop.permute.xlu0 %1041
  %vm1043 = vcmp.eq.s32.totalorder %v1042, 1
  %v1044 = vsel %vm1043, %v1034, %v918
  %1045 = vst [vmem:[%s7] sm:$0xff] %v1044
  %v1046 = vsel %vm1043, %v1036, %v917
  %1047 = vst [vmem:[%s6] sm:$0xff] %v1046
  %v1048 = vsel %vm1043, %v1036, 0.0
  %s1049 = scalar_lea.vmem %s5, 16
  %1050 = vst [vmem:[%s1049] sm:$0xff] %v1048
  %s1051 = sadd.s32 %s487, 3
  %v1052 = vld [vmem:[%s6] sm:$0xff]
  %v1053 = vld [vmem:[%s7] sm:$0xff]
  %s1054 = smul.u32 3, 4
  %s1055 = smul.addr %s1054, 8
  %s1056 = scalar_lea.vmem [#allocation2], %s1055
  %v1057 = vld [vmem:[%s1056] sm:$0xff]
  %v1058 = vld [vmem:[%s1056 + $0x8] sm:$0xff]
  %v1059 = vld [vmem:[%s1056 + $0x10] sm:$0xff]
  %v1060 = vld [vmem:[%s1056 + $0x18] sm:$0xff]
  %v1061 = vpack.c.bf16 %v1052, %v1052
  %1062 = vmatprep.subr.bf16.mxu0 %v595
  %1063 = vmatpush1.bf16.msra.mxu0 %v594
  %1064 = vmatprep.subr.bf16.mxu0 %v599
  %1065 = vmatpush1.bf16.msra.mxu0 %v598
  %1066 = vmatprep.subr.bf16.mxu0 %v603
  %1067 = vmatpush1.bf16.msra.mxu0 %v602
  %1068 = vmatprep.subr.bf16.mxu0 %v607
  %1069 = vmatpush1.bf16.msra.mxu0 %v606
  %1070 = vmatprep.subr.bf16.mxu0 %v611
  %1071 = vmatpush1.bf16.msra.mxu0 %v610
  %1072 = vmatprep.subr.bf16.mxu0 %v615
  %1073 = vmatpush1.bf16.msra.mxu0 %v614
  %1074 = vmatprep.subr.bf16.mxu0 %v619
  %1075 = vmatpush1.bf16.msra.mxu0 %v618
  %1076 = vmatprep.subr.bf16.mxu0 %v623
  %1077 = vmatpush1.bf16.msra.mxu0 %v622
  %1078 = vmatprep.subr.bf16.mxu0 0
  %1079 = vmatpush1.bf16.msra.mxu0 0
  %1080 = vmatprep.subr.bf16.mxu0 0
  %1081 = vmatpush1.bf16.msra.mxu0 0
  %1082 = vmatprep.subr.bf16.mxu0 0
  %1083 = vmatpush1.bf16.msra.mxu0 0
  %1084 = vmatprep.subr.bf16.mxu0 0
  %1085 = vmatpush1.bf16.msra.mxu0 0
  %1086 = vmatprep.subr.bf16.mxu0 0
  %1087 = vmatpush1.bf16.msra.mxu0 0
  %1088 = vmatprep.subr.bf16.mxu0 0
  %1089 = vmatpush1.bf16.msra.mxu0 0
  %1090 = vmatprep.subr.bf16.mxu0 0
  %1091 = vmatpush1.bf16.msra.mxu0 0
  %1092 = vmatprep.subr.bf16.mxu0 0
  %1093 = vmatpush1.bf16.msra.mxu0 0
  %1094 = vmatprep.mubr.bf16.mxu0 0
  %1095 = vmatmul.mubr.bf16.gmra.mrb[0].mxu0 %v1061
  %v1096 = vpop.f32.mrb[0].mxu0
  %v1097 = vadd.f32 0.0, %v1096
  %v1098 = vpop.f32.mrb[0].mxu0
  %v1099 = vadd.f32 0.0, %v1098
  %v1100 = vpop.f32.mrb[0].mxu0
  %v1101 = vpop.f32.mrb[0].mxu0
  %1102 = vdwg.mxu0
  %1103 = vmatprep.subr.bf16.mxu0 %v597
  %1104 = vmatpush1.bf16.msra.mxu0 %v596
  %1105 = vmatprep.subr.bf16.mxu0 %v601
  %1106 = vmatpush1.bf16.msra.mxu0 %v600
  %1107 = vmatprep.subr.bf16.mxu0 %v605
  %1108 = vmatpush1.bf16.msra.mxu0 %v604
  %1109 = vmatprep.subr.bf16.mxu0 %v609
  %1110 = vmatpush1.bf16.msra.mxu0 %v608
  %1111 = vmatprep.subr.bf16.mxu0 %v613
  %1112 = vmatpush1.bf16.msra.mxu0 %v612
  %1113 = vmatprep.subr.bf16.mxu0 %v617
  %1114 = vmatpush1.bf16.msra.mxu0 %v616
  %1115 = vmatprep.subr.bf16.mxu0 %v621
  %1116 = vmatpush1.bf16.msra.mxu0 %v620
  %1117 = vmatprep.subr.bf16.mxu0 %v625
  %1118 = vmatpush1.bf16.msra.mxu0 %v624
  %1119 = vmatprep.subr.bf16.mxu0 0
  %1120 = vmatpush1.bf16.msra.mxu0 0
  %1121 = vmatprep.subr.bf16.mxu0 0
  %1122 = vmatpush1.bf16.msra.mxu0 0
  %1123 = vmatprep.subr.bf16.mxu0 0
  %1124 = vmatpush1.bf16.msra.mxu0 0
  %1125 = vmatprep.subr.bf16.mxu0 0
  %1126 = vmatpush1.bf16.msra.mxu0 0
  %1127 = vmatprep.subr.bf16.mxu0 0
  %1128 = vmatpush1.bf16.msra.mxu0 0
  %1129 = vmatprep.subr.bf16.mxu0 0
  %1130 = vmatpush1.bf16.msra.mxu0 0
  %1131 = vmatprep.subr.bf16.mxu0 0
  %1132 = vmatpush1.bf16.msra.mxu0 0
  %1133 = vmatprep.subr.bf16.mxu0 0
  %1134 = vmatpush1.bf16.msra.mxu0 0
  %1135 = vmatprep.mubr.bf16.mxu0 0
  %1136 = vmatmul.mubr.bf16.gmra.mrb[0].mxu0 %v1061
  %v1137 = vpop.f32.mrb[0].mxu0
  %v1138 = vadd.f32 0.0, %v1137
  %v1139 = vpop.f32.mrb[0].mxu0
  %v1140 = vadd.f32 0.0, %v1139
  %v1141 = vpop.f32.mrb[0].mxu0
  %v1142 = vpop.f32.mrb[0].mxu0
  %1143 = vdwg.mxu0
  %v1144 = vadd.f32 %v1057, %v1097
  %v1145 = vadd.f32 %v1058, %v1099
  %v1146 = vadd.f32 %v1059, %v1138
  %v1147 = vadd.f32 %v1060, %v1140
  %v1148 = vxor.u32 %v1144, 2147483648
  %v1149 = vxor.u32 %v1145, 2147483648
  %v1150 = vxor.u32 %v1146, 2147483648
  %v1151 = vmul.f32 %v1148, 1.442695
  %v1152 = vpow.pop %v1151
  %v1153 = vmul.f32 %v1149, 1.442695
  %v1154 = vpow.pop %v1153
  %v1155 = vmul.f32 %v1150, 1.442695
  %v1156 = vpow.pop %v1155
  %v1157 = vadd.f32 %v1152, 1.0
  %v1158 = vadd.f32 %v1154, 1.0
  %v1159 = vadd.f32 %v1156, 1.0
  %v1160 = vrcp.pop %v1157
  %v1161 = vmul.f32 1.0, %v1160
  %v1162 = vrcp.pop %v1158
  %v1163 = vmul.f32 1.0, %v1162
  %v1164 = vrcp.pop %v1159
  %v1165 = vmul.f32 1.0, %v1164
  %v1166 = vtanh.pop %v1147
  %v1167 = vmul.f32 %v1163, %v1053
  %v1168 = vmul.f32 %v1161, %v1166
  %v1169 = vadd.f32 %v1167, %v1168
  %v1170 = vtanh.pop %v1169
  %v1171 = vmul.f32 %v1165, %v1170
  %v1172 = vstv %s1051
  %vm1173 = vcmp.lt.s32.totalorder %v1172, %v30
  %v1174 = vsel %vm1173, 1, 0
  %1175 = vset.pattern.permute.xlu0 0
  %1176 = vperm.xlu0 %1175, %v1174
  %v1177 = vpop.permute.xlu0 %1176
  %vm1178 = vcmp.eq.s32.totalorder %v1177, 1
  %v1179 = vsel %vm1178, %v1169, %v1053
  %1180 = vst [vmem:[%s7] sm:$0xff] %v1179
  %v1181 = vsel %vm1178, %v1171, %v1052
  %1182 = vst [vmem:[%s6] sm:$0xff] %v1181
  %v1183 = vsel %vm1178, %v1171, 0.0
  %s1184 = scalar_lea.vmem %s5, 24
  %1185 = vst [vmem:[%s1184] sm:$0xff] %v1183
  %s1186 = sadd.s32 %s487, 4
  %v1187 = vld [vmem:[%s6] sm:$0xff]
  %v1188 = vld [vmem:[%s7] sm:$0xff]
  %s1189 = smul.u32 4, 4
  %s1190 = smul.addr %s1189, 8
  %s1191 = scalar_lea.vmem [#allocation2], %s1190
  %v1192 = vld [vmem:[%s1191] sm:$0xff]
  %v1193 = vld [vmem:[%s1191 + $0x8] sm:$0xff]
  %v1194 = vld [vmem:[%s1191 + $0x10] sm:$0xff]
  %v1195 = vld [vmem:[%s1191 + $0x18] sm:$0xff]
  %v1196 = vpack.c.bf16 %v1187, %v1187
  %1197 = vmatprep.subr.bf16.mxu0 %v595
  %1198 = vmatpush1.bf16.msra.mxu0 %v594
  %1199 = vmatprep.subr.bf16.mxu0 %v599
  %1200 = vmatpush1.bf16.msra.mxu0 %v598
  %1201 = vmatprep.subr.bf16.mxu0 %v603
  %1202 = vmatpush1.bf16.msra.mxu0 %v602
  %1203 = vmatprep.subr.bf16.mxu0 %v607
  %1204 = vmatpush1.bf16.msra.mxu0 %v606
  %1205 = vmatprep.subr.bf16.mxu0 %v611
  %1206 = vmatpush1.bf16.msra.mxu0 %v610
  %1207 = vmatprep.subr.bf16.mxu0 %v615
  %1208 = vmatpush1.bf16.msra.mxu0 %v614
  %1209 = vmatprep.subr.bf16.mxu0 %v619
  %1210 = vmatpush1.bf16.msra.mxu0 %v618
  %1211 = vmatprep.subr.bf16.mxu0 %v623
  %1212 = vmatpush1.bf16.msra.mxu0 %v622
  %1213 = vmatprep.subr.bf16.mxu0 0
  %1214 = vmatpush1.bf16.msra.mxu0 0
  %1215 = vmatprep.subr.bf16.mxu0 0
  %1216 = vmatpush1.bf16.msra.mxu0 0
  %1217 = vmatprep.subr.bf16.mxu0 0
  %1218 = vmatpush1.bf16.msra.mxu0 0
  %1219 = vmatprep.subr.bf16.mxu0 0
  %1220 = vmatpush1.bf16.msra.mxu0 0
  %1221 = vmatprep.subr.bf16.mxu0 0
  %1222 = vmatpush1.bf16.msra.mxu0 0
  %1223 = vmatprep.subr.bf16.mxu0 0
  %1224 = vmatpush1.bf16.msra.mxu0 0
  %1225 = vmatprep.subr.bf16.mxu0 0
  %1226 = vmatpush1.bf16.msra.mxu0 0
  %1227 = vmatprep.subr.bf16.mxu0 0
  %1228 = vmatpush1.bf16.msra.mxu0 0
  %1229 = vmatprep.mubr.bf16.mxu0 0
  %1230 = vmatmul.mubr.bf16.gmra.mrb[0].mxu0 %v1196
  %v1231 = vpop.f32.mrb[0].mxu0
  %v1232 = vadd.f32 0.0, %v1231
  %v1233 = vpop.f32.mrb[0].mxu0
  %v1234 = vadd.f32 0.0, %v1233
  %v1235 = vpop.f32.mrb[0].mxu0
  %v1236 = vpop.f32.mrb[0].mxu0
  %1237 = vdwg.mxu0
  %1238 = vmatprep.subr.bf16.mxu0 %v597
  %1239 = vmatpush1.bf16.msra.mxu0 %v596
  %1240 = vmatprep.subr.bf16.mxu0 %v601
  %1241 = vmatpush1.bf16.msra.mxu0 %v600
  %1242 = vmatprep.subr.bf16.mxu0 %v605
  %1243 = vmatpush1.bf16.msra.mxu0 %v604
  %1244 = vmatprep.subr.bf16.mxu0 %v609
  %1245 = vmatpush1.bf16.msra.mxu0 %v608
  %1246 = vmatprep.subr.bf16.mxu0 %v613
  %1247 = vmatpush1.bf16.msra.mxu0 %v612
  %1248 = vmatprep.subr.bf16.mxu0 %v617
  %1249 = vmatpush1.bf16.msra.mxu0 %v616
  %1250 = vmatprep.subr.bf16.mxu0 %v621
  %1251 = vmatpush1.bf16.msra.mxu0 %v620
  %1252 = vmatprep.subr.bf16.mxu0 %v625
  %1253 = vmatpush1.bf16.msra.mxu0 %v624
  %1254 = vmatprep.subr.bf16.mxu0 0
  %1255 = vmatpush1.bf16.msra.mxu0 0
  %1256 = vmatprep.subr.bf16.mxu0 0
  %1257 = vmatpush1.bf16.msra.mxu0 0
  %1258 = vmatprep.subr.bf16.mxu0 0
  %1259 = vmatpush1.bf16.msra.mxu0 0
  %1260 = vmatprep.subr.bf16.mxu0 0
  %1261 = vmatpush1.bf16.msra.mxu0 0
  %1262 = vmatprep.subr.bf16.mxu0 0
  %1263 = vmatpush1.bf16.msra.mxu0 0
  %1264 = vmatprep.subr.bf16.mxu0 0
  %1265 = vmatpush1.bf16.msra.mxu0 0
  %1266 = vmatprep.subr.bf16.mxu0 0
  %1267 = vmatpush1.bf16.msra.mxu0 0
  %1268 = vmatprep.subr.bf16.mxu0 0
  %1269 = vmatpush1.bf16.msra.mxu0 0
  %1270 = vmatprep.mubr.bf16.mxu0 0
  %1271 = vmatmul.mubr.bf16.gmra.mrb[0].mxu0 %v1196
  %v1272 = vpop.f32.mrb[0].mxu0
  %v1273 = vadd.f32 0.0, %v1272
  %v1274 = vpop.f32.mrb[0].mxu0
  %v1275 = vadd.f32 0.0, %v1274
  %v1276 = vpop.f32.mrb[0].mxu0
  %v1277 = vpop.f32.mrb[0].mxu0
  %1278 = vdwg.mxu0
  %v1279 = vadd.f32 %v1192, %v1232
  %v1280 = vadd.f32 %v1193, %v1234
  %v1281 = vadd.f32 %v1194, %v1273
  %v1282 = vadd.f32 %v1195, %v1275
  %v1283 = vxor.u32 %v1279, 2147483648
  %v1284 = vxor.u32 %v1280, 2147483648
  %v1285 = vxor.u32 %v1281, 2147483648
  %v1286 = vmul.f32 %v1283, 1.442695
  %v1287 = vpow.pop %v1286
  %v1288 = vmul.f32 %v1284, 1.442695
  %v1289 = vpow.pop %v1288
  %v1290 = vmul.f32 %v1285, 1.442695
  %v1291 = vpow.pop %v1290
  %v1292 = vadd.f32 %v1287, 1.0
  %v1293 = vadd.f32 %v1289, 1.0
  %v1294 = vadd.f32 %v1291, 1.0
  %v1295 = vrcp.pop %v1292
  %v1296 = vmul.f32 1.0, %v1295
  %v1297 = vrcp.pop %v1293
  %v1298 = vmul.f32 1.0, %v1297
  %v1299 = vrcp.pop %v1294
  %v1300 = vmul.f32 1.0, %v1299
  %v1301 = vtanh.pop %v1282
  %v1302 = vmul.f32 %v1298, %v1188
  %v1303 = vmul.f32 %v1296, %v1301
  %v1304 = vadd.f32 %v1302, %v1303
  %v1305 = vtanh.pop %v1304
  %v1306 = vmul.f32 %v1300, %v1305
  %v1307 = vstv %s1186
  %vm1308 = vcmp.lt.s32.totalorder %v1307, %v30
  %v1309 = vsel %vm1308, 1, 0
  %1310 = vset.pattern.permute.xlu0 0
  %1311 = vperm.xlu0 %1310, %v1309
  %v1312 = vpop.permute.xlu0 %1311
  %vm1313 = vcmp.eq.s32.totalorder %v1312, 1
  %v1314 = vsel %vm1313, %v1304, %v1188
  %1315 = vst [vmem:[%s7] sm:$0xff] %v1314
  %v1316 = vsel %vm1313, %v1306, %v1187
  %1317 = vst [vmem:[%s6] sm:$0xff] %v1316
  %v1318 = vsel %vm1313, %v1306, 0.0
  %s1319 = scalar_lea.vmem %s5, 32
  %1320 = vst [vmem:[%s1319] sm:$0xff] %v1318
  %s1321 = sadd.s32 %s487, 5
  %v1322 = vld [vmem:[%s6] sm:$0xff]
  %v1323 = vld [vmem:[%s7] sm:$0xff]
  %s1324 = smul.u32 5, 4
  %s1325 = smul.addr %s1324, 8
  %s1326 = scalar_lea.vmem [#allocation2], %s1325
  %v1327 = vld [vmem:[%s1326] sm:$0xff]
  %v1328 = vld [vmem:[%s1326 + $0x8] sm:$0xff]
  %v1329 = vld [vmem:[%s1326 + $0x10] sm:$0xff]
  %v1330 = vld [vmem:[%s1326 + $0x18] sm:$0xff]
  %v1331 = vpack.c.bf16 %v1322, %v1322
  %1332 = vmatprep.subr.bf16.mxu0 %v595
  %1333 = vmatpush1.bf16.msra.mxu0 %v594
  %1334 = vmatprep.subr.bf16.mxu0 %v599
  %1335 = vmatpush1.bf16.msra.mxu0 %v598
  %1336 = vmatprep.subr.bf16.mxu0 %v603
  %1337 = vmatpush1.bf16.msra.mxu0 %v602
  %1338 = vmatprep.subr.bf16.mxu0 %v607
  %1339 = vmatpush1.bf16.msra.mxu0 %v606
  %1340 = vmatprep.subr.bf16.mxu0 %v611
  %1341 = vmatpush1.bf16.msra.mxu0 %v610
  %1342 = vmatprep.subr.bf16.mxu0 %v615
  %1343 = vmatpush1.bf16.msra.mxu0 %v614
  %1344 = vmatprep.subr.bf16.mxu0 %v619
  %1345 = vmatpush1.bf16.msra.mxu0 %v618
  %1346 = vmatprep.subr.bf16.mxu0 %v623
  %1347 = vmatpush1.bf16.msra.mxu0 %v622
  %1348 = vmatprep.subr.bf16.mxu0 0
  %1349 = vmatpush1.bf16.msra.mxu0 0
  %1350 = vmatprep.subr.bf16.mxu0 0
  %1351 = vmatpush1.bf16.msra.mxu0 0
  %1352 = vmatprep.subr.bf16.mxu0 0
  %1353 = vmatpush1.bf16.msra.mxu0 0
  %1354 = vmatprep.subr.bf16.mxu0 0
  %1355 = vmatpush1.bf16.msra.mxu0 0
  %1356 = vmatprep.subr.bf16.mxu0 0
  %1357 = vmatpush1.bf16.msra.mxu0 0
  %1358 = vmatprep.subr.bf16.mxu0 0
  %1359 = vmatpush1.bf16.msra.mxu0 0
  %1360 = vmatprep.subr.bf16.mxu0 0
  %1361 = vmatpush1.bf16.msra.mxu0 0
  %1362 = vmatprep.subr.bf16.mxu0 0
  %1363 = vmatpush1.bf16.msra.mxu0 0
  %1364 = vmatprep.mubr.bf16.mxu0 0
  %1365 = vmatmul.mubr.bf16.gmra.mrb[0].mxu0 %v1331
  %v1366 = vpop.f32.mrb[0].mxu0
  %v1367 = vadd.f32 0.0, %v1366
  %v1368 = vpop.f32.mrb[0].mxu0
  %v1369 = vadd.f32 0.0, %v1368
  %v1370 = vpop.f32.mrb[0].mxu0
  %v1371 = vpop.f32.mrb[0].mxu0
  %1372 = vdwg.mxu0
  %1373 = vmatprep.subr.bf16.mxu0 %v597
  %1374 = vmatpush1.bf16.msra.mxu0 %v596
  %1375 = vmatprep.subr.bf16.mxu0 %v601
  %1376 = vmatpush1.bf16.msra.mxu0 %v600
  %1377 = vmatprep.subr.bf16.mxu0 %v605
  %1378 = vmatpush1.bf16.msra.mxu0 %v604
  %1379 = vmatprep.subr.bf16.mxu0 %v609
  %1380 = vmatpush1.bf16.msra.mxu0 %v608
  %1381 = vmatprep.subr.bf16.mxu0 %v613
  %1382 = vmatpush1.bf16.msra.mxu0 %v612
  %1383 = vmatprep.subr.bf16.mxu0 %v617
  %1384 = vmatpush1.bf16.msra.mxu0 %v616
  %1385 = vmatprep.subr.bf16.mxu0 %v621
  %1386 = vmatpush1.bf16.msra.mxu0 %v620
  %1387 = vmatprep.subr.bf16.mxu0 %v625
  %1388 = vmatpush1.bf16.msra.mxu0 %v624
  %1389 = vmatprep.subr.bf16.mxu0 0
  %1390 = vmatpush1.bf16.msra.mxu0 0
  %1391 = vmatprep.subr.bf16.mxu0 0
  %1392 = vmatpush1.bf16.msra.mxu0 0
  %1393 = vmatprep.subr.bf16.mxu0 0
  %1394 = vmatpush1.bf16.msra.mxu0 0
  %1395 = vmatprep.subr.bf16.mxu0 0
  %1396 = vmatpush1.bf16.msra.mxu0 0
  %1397 = vmatprep.subr.bf16.mxu0 0
  %1398 = vmatpush1.bf16.msra.mxu0 0
  %1399 = vmatprep.subr.bf16.mxu0 0
  %1400 = vmatpush1.bf16.msra.mxu0 0
  %1401 = vmatprep.subr.bf16.mxu0 0
  %1402 = vmatpush1.bf16.msra.mxu0 0
  %1403 = vmatprep.subr.bf16.mxu0 0
  %1404 = vmatpush1.bf16.msra.mxu0 0
  %1405 = vmatprep.mubr.bf16.mxu0 0
  %1406 = vmatmul.mubr.bf16.gmra.mrb[0].mxu0 %v1331
  %v1407 = vpop.f32.mrb[0].mxu0
  %v1408 = vadd.f32 0.0, %v1407
  %v1409 = vpop.f32.mrb[0].mxu0
  %v1410 = vadd.f32 0.0, %v1409
  %v1411 = vpop.f32.mrb[0].mxu0
  %v1412 = vpop.f32.mrb[0].mxu0
  %1413 = vdwg.mxu0
  %v1414 = vadd.f32 %v1327, %v1367
  %v1415 = vadd.f32 %v1328, %v1369
  %v1416 = vadd.f32 %v1329, %v1408
  %v1417 = vadd.f32 %v1330, %v1410
  %v1418 = vxor.u32 %v1414, 2147483648
  %v1419 = vxor.u32 %v1415, 2147483648
  %v1420 = vxor.u32 %v1416, 2147483648
  %v1421 = vmul.f32 %v1418, 1.442695
  %v1422 = vpow.pop %v1421
  %v1423 = vmul.f32 %v1419, 1.442695
  %v1424 = vpow.pop %v1423
  %v1425 = vmul.f32 %v1420, 1.442695
  %v1426 = vpow.pop %v1425
  %v1427 = vadd.f32 %v1422, 1.0
  %v1428 = vadd.f32 %v1424, 1.0
  %v1429 = vadd.f32 %v1426, 1.0
  %v1430 = vrcp.pop %v1427
  %v1431 = vmul.f32 1.0, %v1430
  %v1432 = vrcp.pop %v1428
  %v1433 = vmul.f32 1.0, %v1432
  %v1434 = vrcp.pop %v1429
  %v1435 = vmul.f32 1.0, %v1434
  %v1436 = vtanh.pop %v1417
  %v1437 = vmul.f32 %v1433, %v1323
  %v1438 = vmul.f32 %v1431, %v1436
  %v1439 = vadd.f32 %v1437, %v1438
  %v1440 = vtanh.pop %v1439
  %v1441 = vmul.f32 %v1435, %v1440
  %v1442 = vstv %s1321
  %vm1443 = vcmp.lt.s32.totalorder %v1442, %v30
  %v1444 = vsel %vm1443, 1, 0
  %1445 = vset.pattern.permute.xlu0 0
  %1446 = vperm.xlu0 %1445, %v1444
  %v1447 = vpop.permute.xlu0 %1446
  %vm1448 = vcmp.eq.s32.totalorder %v1447, 1
  %v1449 = vsel %vm1448, %v1439, %v1323
  %1450 = vst [vmem:[%s7] sm:$0xff] %v1449
  %v1451 = vsel %vm1448, %v1441, %v1322
  %1452 = vst [vmem:[%s6] sm:$0xff] %v1451
  %v1453 = vsel %vm1448, %v1441, 0.0
  %s1454 = scalar_lea.vmem %s5, 40
  %1455 = vst [vmem:[%s1454] sm:$0xff] %v1453
  %s1456 = sadd.s32 %s487, 6
  %v1457 = vld [vmem:[%s6] sm:$0xff]
  %v1458 = vld [vmem:[%s7] sm:$0xff]
  %s1459 = smul.u32 6, 4
  %s1460 = smul.addr %s1459, 8
  %s1461 = scalar_lea.vmem [#allocation2], %s1460
  %v1462 = vld [vmem:[%s1461] sm:$0xff]
  %v1463 = vld [vmem:[%s1461 + $0x8] sm:$0xff]
  %v1464 = vld [vmem:[%s1461 + $0x10] sm:$0xff]
  %v1465 = vld [vmem:[%s1461 + $0x18] sm:$0xff]
  %v1466 = vpack.c.bf16 %v1457, %v1457
  %1467 = vmatprep.subr.bf16.mxu0 %v595
  %1468 = vmatpush1.bf16.msra.mxu0 %v594
  %1469 = vmatprep.subr.bf16.mxu0 %v599
  %1470 = vmatpush1.bf16.msra.mxu0 %v598
  %1471 = vmatprep.subr.bf16.mxu0 %v603
  %1472 = vmatpush1.bf16.msra.mxu0 %v602
  %1473 = vmatprep.subr.bf16.mxu0 %v607
  %1474 = vmatpush1.bf16.msra.mxu0 %v606
  %1475 = vmatprep.subr.bf16.mxu0 %v611
  %1476 = vmatpush1.bf16.msra.mxu0 %v610
  %1477 = vmatprep.subr.bf16.mxu0 %v615
  %1478 = vmatpush1.bf16.msra.mxu0 %v614
  %1479 = vmatprep.subr.bf16.mxu0 %v619
  %1480 = vmatpush1.bf16.msra.mxu0 %v618
  %1481 = vmatprep.subr.bf16.mxu0 %v623
  %1482 = vmatpush1.bf16.msra.mxu0 %v622
  %1483 = vmatprep.subr.bf16.mxu0 0
  %1484 = vmatpush1.bf16.msra.mxu0 0
  %1485 = vmatprep.subr.bf16.mxu0 0
  %1486 = vmatpush1.bf16.msra.mxu0 0
  %1487 = vmatprep.subr.bf16.mxu0 0
  %1488 = vmatpush1.bf16.msra.mxu0 0
  %1489 = vmatprep.subr.bf16.mxu0 0
  %1490 = vmatpush1.bf16.msra.mxu0 0
  %1491 = vmatprep.subr.bf16.mxu0 0
  %1492 = vmatpush1.bf16.msra.mxu0 0
  %1493 = vmatprep.subr.bf16.mxu0 0
  %1494 = vmatpush1.bf16.msra.mxu0 0
  %1495 = vmatprep.subr.bf16.mxu0 0
  %1496 = vmatpush1.bf16.msra.mxu0 0
  %1497 = vmatprep.subr.bf16.mxu0 0
  %1498 = vmatpush1.bf16.msra.mxu0 0
  %1499 = vmatprep.mubr.bf16.mxu0 0
  %1500 = vmatmul.mubr.bf16.gmra.mrb[0].mxu0 %v1466
  %v1501 = vpop.f32.mrb[0].mxu0
  %v1502 = vadd.f32 0.0, %v1501
  %v1503 = vpop.f32.mrb[0].mxu0
  %v1504 = vadd.f32 0.0, %v1503
  %v1505 = vpop.f32.mrb[0].mxu0
  %v1506 = vpop.f32.mrb[0].mxu0
  %1507 = vdwg.mxu0
  %1508 = vmatprep.subr.bf16.mxu0 %v597
  %1509 = vmatpush1.bf16.msra.mxu0 %v596
  %1510 = vmatprep.subr.bf16.mxu0 %v601
  %1511 = vmatpush1.bf16.msra.mxu0 %v600
  %1512 = vmatprep.subr.bf16.mxu0 %v605
  %1513 = vmatpush1.bf16.msra.mxu0 %v604
  %1514 = vmatprep.subr.bf16.mxu0 %v609
  %1515 = vmatpush1.bf16.msra.mxu0 %v608
  %1516 = vmatprep.subr.bf16.mxu0 %v613
  %1517 = vmatpush1.bf16.msra.mxu0 %v612
  %1518 = vmatprep.subr.bf16.mxu0 %v617
  %1519 = vmatpush1.bf16.msra.mxu0 %v616
  %1520 = vmatprep.subr.bf16.mxu0 %v621
  %1521 = vmatpush1.bf16.msra.mxu0 %v620
  %1522 = vmatprep.subr.bf16.mxu0 %v625
  %1523 = vmatpush1.bf16.msra.mxu0 %v624
  %1524 = vmatprep.subr.bf16.mxu0 0
  %1525 = vmatpush1.bf16.msra.mxu0 0
  %1526 = vmatprep.subr.bf16.mxu0 0
  %1527 = vmatpush1.bf16.msra.mxu0 0
  %1528 = vmatprep.subr.bf16.mxu0 0
  %1529 = vmatpush1.bf16.msra.mxu0 0
  %1530 = vmatprep.subr.bf16.mxu0 0
  %1531 = vmatpush1.bf16.msra.mxu0 0
  %1532 = vmatprep.subr.bf16.mxu0 0
  %1533 = vmatpush1.bf16.msra.mxu0 0
  %1534 = vmatprep.subr.bf16.mxu0 0
  %1535 = vmatpush1.bf16.msra.mxu0 0
  %1536 = vmatprep.subr.bf16.mxu0 0
  %1537 = vmatpush1.bf16.msra.mxu0 0
  %1538 = vmatprep.subr.bf16.mxu0 0
  %1539 = vmatpush1.bf16.msra.mxu0 0
  %1540 = vmatprep.mubr.bf16.mxu0 0
  %1541 = vmatmul.mubr.bf16.gmra.mrb[0].mxu0 %v1466
  %v1542 = vpop.f32.mrb[0].mxu0
  %v1543 = vadd.f32 0.0, %v1542
  %v1544 = vpop.f32.mrb[0].mxu0
  %v1545 = vadd.f32 0.0, %v1544
  %v1546 = vpop.f32.mrb[0].mxu0
  %v1547 = vpop.f32.mrb[0].mxu0
  %1548 = vdwg.mxu0
  %v1549 = vadd.f32 %v1462, %v1502
  %v1550 = vadd.f32 %v1463, %v1504
  %v1551 = vadd.f32 %v1464, %v1543
  %v1552 = vadd.f32 %v1465, %v1545
  %v1553 = vxor.u32 %v1549, 2147483648
  %v1554 = vxor.u32 %v1550, 2147483648
  %v1555 = vxor.u32 %v1551, 2147483648
  %v1556 = vmul.f32 %v1553, 1.442695
  %v1557 = vpow.pop %v1556
  %v1558 = vmul.f32 %v1554, 1.442695
  %v1559 = vpow.pop %v1558
  %v1560 = vmul.f32 %v1555, 1.442695
  %v1561 = vpow.pop %v1560
  %v1562 = vadd.f32 %v1557, 1.0
  %v1563 = vadd.f32 %v1559, 1.0
  %v1564 = vadd.f32 %v1561, 1.0
  %v1565 = vrcp.pop %v1562
  %v1566 = vmul.f32 1.0, %v1565
  %v1567 = vrcp.pop %v1563
  %v1568 = vmul.f32 1.0, %v1567
  %v1569 = vrcp.pop %v1564
  %v1570 = vmul.f32 1.0, %v1569
  %v1571 = vtanh.pop %v1552
  %v1572 = vmul.f32 %v1568, %v1458
  %v1573 = vmul.f32 %v1566, %v1571
  %v1574 = vadd.f32 %v1572, %v1573
  %v1575 = vtanh.pop %v1574
  %v1576 = vmul.f32 %v1570, %v1575
  %v1577 = vstv %s1456
  %vm1578 = vcmp.lt.s32.totalorder %v1577, %v30
  %v1579 = vsel %vm1578, 1, 0
  %1580 = vset.pattern.permute.xlu0 0
  %1581 = vperm.xlu0 %1580, %v1579
  %v1582 = vpop.permute.xlu0 %1581
  %vm1583 = vcmp.eq.s32.totalorder %v1582, 1
  %v1584 = vsel %vm1583, %v1574, %v1458
  %1585 = vst [vmem:[%s7] sm:$0xff] %v1584
  %v1586 = vsel %vm1583, %v1576, %v1457
  %1587 = vst [vmem:[%s6] sm:$0xff] %v1586
  %v1588 = vsel %vm1583, %v1576, 0.0
  %s1589 = scalar_lea.vmem %s5, 48
  %1590 = vst [vmem:[%s1589] sm:$0xff] %v1588
  %s1591 = sadd.s32 %s487, 7
  %v1592 = vld [vmem:[%s6] sm:$0xff]
  %v1593 = vld [vmem:[%s7] sm:$0xff]
  %s1594 = smul.u32 7, 4
  %s1595 = smul.addr %s1594, 8
  %s1596 = scalar_lea.vmem [#allocation2], %s1595
  %v1597 = vld [vmem:[%s1596] sm:$0xff]
  %v1598 = vld [vmem:[%s1596 + $0x8] sm:$0xff]
  %v1599 = vld [vmem:[%s1596 + $0x10] sm:$0xff]
  %v1600 = vld [vmem:[%s1596 + $0x18] sm:$0xff]
  %v1601 = vpack.c.bf16 %v1592, %v1592
  %1602 = vmatprep.subr.bf16.mxu0 %v595
  %1603 = vmatpush1.bf16.msra.mxu0 %v594
  %1604 = vmatprep.subr.bf16.mxu0 %v599
  %1605 = vmatpush1.bf16.msra.mxu0 %v598
  %1606 = vmatprep.subr.bf16.mxu0 %v603
  %1607 = vmatpush1.bf16.msra.mxu0 %v602
  %1608 = vmatprep.subr.bf16.mxu0 %v607
  %1609 = vmatpush1.bf16.msra.mxu0 %v606
  %1610 = vmatprep.subr.bf16.mxu0 %v611
  %1611 = vmatpush1.bf16.msra.mxu0 %v610
  %1612 = vmatprep.subr.bf16.mxu0 %v615
  %1613 = vmatpush1.bf16.msra.mxu0 %v614
  %1614 = vmatprep.subr.bf16.mxu0 %v619
  %1615 = vmatpush1.bf16.msra.mxu0 %v618
  %1616 = vmatprep.subr.bf16.mxu0 %v623
  %1617 = vmatpush1.bf16.msra.mxu0 %v622
  %1618 = vmatprep.subr.bf16.mxu0 0
  %1619 = vmatpush1.bf16.msra.mxu0 0
  %1620 = vmatprep.subr.bf16.mxu0 0
  %1621 = vmatpush1.bf16.msra.mxu0 0
  %1622 = vmatprep.subr.bf16.mxu0 0
  %1623 = vmatpush1.bf16.msra.mxu0 0
  %1624 = vmatprep.subr.bf16.mxu0 0
  %1625 = vmatpush1.bf16.msra.mxu0 0
  %1626 = vmatprep.subr.bf16.mxu0 0
  %1627 = vmatpush1.bf16.msra.mxu0 0
  %1628 = vmatprep.subr.bf16.mxu0 0
  %1629 = vmatpush1.bf16.msra.mxu0 0
  %1630 = vmatprep.subr.bf16.mxu0 0
  %1631 = vmatpush1.bf16.msra.mxu0 0
  %1632 = vmatprep.subr.bf16.mxu0 0
  %1633 = vmatpush1.bf16.msra.mxu0 0
  %1634 = vmatprep.mubr.bf16.mxu0 0
  %1635 = vmatmul.mubr.bf16.gmra.mrb[0].mxu0 %v1601
  %v1636 = vpop.f32.mrb[0].mxu0
  %v1637 = vadd.f32 0.0, %v1636
  %v1638 = vpop.f32.mrb[0].mxu0
  %v1639 = vadd.f32 0.0, %v1638
  %v1640 = vpop.f32.mrb[0].mxu0
  %v1641 = vpop.f32.mrb[0].mxu0
  %1642 = vdwg.mxu0
  %1643 = vmatprep.subr.bf16.mxu0 %v597
  %1644 = vmatpush1.bf16.msra.mxu0 %v596
  %1645 = vmatprep.subr.bf16.mxu0 %v601
  %1646 = vmatpush1.bf16.msra.mxu0 %v600
  %1647 = vmatprep.subr.bf16.mxu0 %v605
  %1648 = vmatpush1.bf16.msra.mxu0 %v604
  %1649 = vmatprep.subr.bf16.mxu0 %v609
  %1650 = vmatpush1.bf16.msra.mxu0 %v608
  %1651 = vmatprep.subr.bf16.mxu0 %v613
  %1652 = vmatpush1.bf16.msra.mxu0 %v612
  %1653 = vmatprep.subr.bf16.mxu0 %v617
  %1654 = vmatpush1.bf16.msra.mxu0 %v616
  %1655 = vmatprep.subr.bf16.mxu0 %v621
  %1656 = vmatpush1.bf16.msra.mxu0 %v620
  %1657 = vmatprep.subr.bf16.mxu0 %v625
  %1658 = vmatpush1.bf16.msra.mxu0 %v624
  %1659 = vmatprep.subr.bf16.mxu0 0
  %1660 = vmatpush1.bf16.msra.mxu0 0
  %1661 = vmatprep.subr.bf16.mxu0 0
  %1662 = vmatpush1.bf16.msra.mxu0 0
  %1663 = vmatprep.subr.bf16.mxu0 0
  %1664 = vmatpush1.bf16.msra.mxu0 0
  %1665 = vmatprep.subr.bf16.mxu0 0
  %1666 = vmatpush1.bf16.msra.mxu0 0
  %1667 = vmatprep.subr.bf16.mxu0 0
  %1668 = vmatpush1.bf16.msra.mxu0 0
  %1669 = vmatprep.subr.bf16.mxu0 0
  %1670 = vmatpush1.bf16.msra.mxu0 0
  %1671 = vmatprep.subr.bf16.mxu0 0
  %1672 = vmatpush1.bf16.msra.mxu0 0
  %1673 = vmatprep.subr.bf16.mxu0 0
  %1674 = vmatpush1.bf16.msra.mxu0 0
  %1675 = vmatprep.mubr.bf16.mxu0 0
  %1676 = vmatmul.mubr.bf16.gmra.mrb[0].mxu0 %v1601
  %v1677 = vpop.f32.mrb[0].mxu0
  %v1678 = vadd.f32 0.0, %v1677
  %v1679 = vpop.f32.mrb[0].mxu0
  %v1680 = vadd.f32 0.0, %v1679
  %v1681 = vpop.f32.mrb[0].mxu0
  %v1682 = vpop.f32.mrb[0].mxu0
  %1683 = vdwg.mxu0
  %v1684 = vadd.f32 %v1597, %v1637
  %v1685 = vadd.f32 %v1598, %v1639
  %v1686 = vadd.f32 %v1599, %v1678
  %v1687 = vadd.f32 %v1600, %v1680
  %v1688 = vxor.u32 %v1684, 2147483648
  %v1689 = vxor.u32 %v1685, 2147483648
  %v1690 = vxor.u32 %v1686, 2147483648
  %v1691 = vmul.f32 %v1688, 1.442695
  %v1692 = vpow.pop %v1691
  %v1693 = vmul.f32 %v1689, 1.442695
  %v1694 = vpow.pop %v1693
  %v1695 = vmul.f32 %v1690, 1.442695
  %v1696 = vpow.pop %v1695
  %v1697 = vadd.f32 %v1692, 1.0
  %v1698 = vadd.f32 %v1694, 1.0
  %v1699 = vadd.f32 %v1696, 1.0
  %v1700 = vrcp.pop %v1697
  %v1701 = vmul.f32 1.0, %v1700
  %v1702 = vrcp.pop %v1698
  %v1703 = vmul.f32 1.0, %v1702
  %v1704 = vrcp.pop %v1699
  %v1705 = vmul.f32 1.0, %v1704
  %v1706 = vtanh.pop %v1687
  %v1707 = vmul.f32 %v1703, %v1593
  %v1708 = vmul.f32 %v1701, %v1706
  %v1709 = vadd.f32 %v1707, %v1708
  %v1710 = vtanh.pop %v1709
  %v1711 = vmul.f32 %v1705, %v1710
  %v1712 = vstv %s1591
  %vm1713 = vcmp.lt.s32.totalorder %v1712, %v30
  %v1714 = vsel %vm1713, 1, 0
  %1715 = vset.pattern.permute.xlu0 0
  %1716 = vperm.xlu0 %1715, %v1714
  %v1717 = vpop.permute.xlu0 %1716
  %vm1718 = vcmp.eq.s32.totalorder %v1717, 1
  %v1719 = vsel %vm1718, %v1709, %v1593
  %1720 = vst [vmem:[%s7] sm:$0xff] %v1719
  %v1721 = vsel %vm1718, %v1711, %v1592
  %1722 = vst [vmem:[%s6] sm:$0xff] %v1721
  %v1723 = vsel %vm1718, %v1711, 0.0
  %s1724 = scalar_lea.vmem %s5, 56
  %1725 = vst [vmem:[%s1724] sm:$0xff] %v1723
  // Predicated region
  $region26: #{lstm_event_specific_pack.1} parent=0 // pred_check
    _
  $region27: #{lstm_event_specific_pack.1} parent=0 // pred_check_branch
    %1727 = sbr.rel (0) target = $region29
  $region28: #{lstm_event_specific_pack.1} parent=0 // pred_region
    _
  $region29: #{lstm_event_specific_pack.1} parent=0 // pred_fallthru
    _
  // Predicated region
  $region30: #{lstm_event_specific_pack.1} parent=0 // pred_check
    _
  $region31: #{lstm_event_specific_pack.1} parent=0 // pred_check_branch
    %1729 = sbr.rel (0) target = $region33
  $region32: #{lstm_event_specific_pack.1} parent=0 // pred_region
    _
  $region33: #{lstm_event_specific_pack.1} parent=0 // pred_fallthru
    _
  // Predicated region
  $region34: #{lstm_event_specific_pack.1} parent=0 // pred_check
    _
  $region35: #{lstm_event_specific_pack.1} parent=0 // pred_check_branch
    %1731 = sbr.rel (0) target = $region37
  $region36: #{lstm_event_specific_pack.1} parent=0 // pred_region
    _
  $region37: #{lstm_event_specific_pack.1} parent=0 // pred_fallthru
    _
  // Predicated region
  $region38: #{lstm_event_specific_pack.1} parent=0 // pred_check
    _
  $region39: #{lstm_event_specific_pack.1} parent=0 // pred_check_branch
    %1733 = sbr.rel (0) target = $region41
  $region40: #{lstm_event_specific_pack.1} parent=0 // pred_region
    _
  $region41: #{lstm_event_specific_pack.1} parent=0 // pred_fallthru
    _
  // Predicated region
  $region42: #{lstm_event_specific_pack.1} parent=0 // pred_check
    _
  $region43: #{lstm_event_specific_pack.1} parent=0 // pred_check_branch
    %1735 = sbr.rel (0) target = $region45
  $region44: #{lstm_event_specific_pack.1} parent=0 // pred_region
    _
  $region45: #{lstm_event_specific_pack.1} parent=0 // pred_fallthru
    _
  // Predicated region
  $region46: #{lstm_event_specific_pack.1} parent=0 // pred_check
    _
  $region47: #{lstm_event_specific_pack.1} parent=0 // pred_check_branch
    %1737 = sbr.rel (0) target = $region49
  $region48: #{lstm_event_specific_pack.1} parent=0 // pred_region
    _
  $region49: #{lstm_event_specific_pack.1} parent=0 // pred_fallthru
    _

</llo_original>
